<compile_context>
chip_gen: v6e
topology: v6e:2x2x1
jax: 0.10.0
libtpu: 0.0.40
codegen_flags: <defaults>
</compile_context>

<pallas_src>
import jax
import jax.numpy as jnp
from jax.experimental import pallas as pl
from jax.experimental.pallas import tpu as pltpu

# ---- small, deterministic problem sizes (consistent with the module) -------
HIDDEN = 32                    # hidden_size
INPUT = 8                      # input_size = len(hostnames)
NUM_CLASSES = 3
NUM_LAYERS = 2
NUM_TIMESTEP_PREV = 3
OUTPUT_SIZE = 8                # output_size = num_hosts = len(hostnames)
TRAIN_WINDOW = 8               # train_window (seq length)
FC_OUT = OUTPUT_SIZE * NUM_CLASSES * NUM_TIMESTEP_PREV  # 72

LANES = 4 * HIDDEN             # 128 = gate width == native lane count

# Row offsets inside the packed bf16 weight slab.
_R_WIH0 = 0
_R_WHH0 = _R_WIH0 + INPUT                  # 8
_R_W1 = _R_WHH0 + HIDDEN                   # 40   (w_ih_l1 rows)
_R_WHH1 = _R_W1 + HIDDEN                   # 72   (w_hh_l1 rows)
_R_WFC = _R_WHH1 + HIDDEN                  # 104  (fc weight rows)
_R_END = _R_WFC + TRAIN_WINDOW * HIDDEN    # 360


def _gates_to_hc(gates, c, H):
    """PyTorch gate order i,f,g,o.

    The i/f/o pre-activations were pre-scaled by 0.5 at pack time, so a single
    tanh pass over the whole (1,4H) vector yields:
        sigma(a) = 0.5*(1 + tanh(a/2))   for i, f, o
        tanh(a)                           for g
    """
    th = jnp.tanh(gates)                       # ONE EUP pass over all 4 gates
    i = 0.5 * (th[:, 0:H] + 1.0)
    f = 0.5 * (th[:, H:2 * H] + 1.0)
    g = th[:, 2 * H:3 * H]
    o = 0.5 * (th[:, 3 * H:4 * H] + 1.0)
    c_new = f * c + i * g
    h_new = o * jnp.tanh(c_new)
    return h_new, c_new


def lstm_kernel(x_ref, w_ref, b_ref, out_ref):
    H, T = HIDDEN, TRAIN_WINDOW

    # Static slices of the packed bf16 weight slab.
    w_ih0 = w_ref[_R_WIH0:_R_WHH0, :]      # (I, 4H)
    w_hh0 = w_ref[_R_WHH0:_R_W1, :]        # (H, 4H)
    w_ih1 = w_ref[_R_W1:_R_WHH1, :]        # (H, 4H)
    w_hh1 = w_ref[_R_WHH1:_R_WFC, :]       # (H, 4H)

    b0 = b_ref[0:1, :]                     # (1, 4H) f32 (b_ih + b_hh, layer 0, prescaled)
    b1 = b_ref[1:2, :]                     # (1, 4H) f32 (b_ih + b_hh, layer 1, prescaled)

    # Hoisted layer-0 input projection: one (T,I)@(I,4H) matmul, f32 accum.
    xg = jnp.dot(x_ref[...], w_ih0, preferred_element_type=jnp.float32) + b0

    zero = jnp.zeros((1, H), jnp.float32)
    h0, c0, h1, c1 = zero, zero, zero, zero

    # FC head as a running accumulation (off the serial h/c chain).
    acc_fc = b_ref[2:3, :]                                            # (1, 128)

    # Fully unrolled recurrence (T is a small static constant).
    for t in range(T):
        h1_prev = h1.astype(jnp.bfloat16)     # layer-1 feedback from step t-1
        g0 = xg[t:t + 1, :] + jnp.dot(h0.astype(jnp.bfloat16), w_hh0,
                                      preferred_element_type=jnp.float32)
        h0, c0 = _gates_to_hc(g0, c0, H)
        # TODO(synk): nn.LSTM inter-layer dropout (p=0.2) skipped (eval semantics).
        g1 = (jnp.dot(h0.astype(jnp.bfloat16), w_ih1,
                      preferred_element_type=jnp.float32)
              + jnp.dot(h1_prev, w_hh1, preferred_element_type=jnp.float32)
              + b1)
        h1, c1 = _gates_to_hc(g1, c1, H)
        # acc_fc += h1_t @ fc_w.T[t*H:(t+1)*H, :]  (cheap, hides under idle MXU)
        acc_fc = acc_fc + jnp.dot(
            h1.astype(jnp.bfloat16),
            w_ref[_R_WFC + t * H:_R_WFC + (t + 1) * H, :],
            preferred_element_type=jnp.float32)

    # Single lane-dense (8,128) output block; masked VMEM sub-stores:
    #   row 0      = fc output (lanes [0,FC_OUT) valid)
    #   rows 1..4  = h_n[0], h_n[1], c_n[0], c_n[1] (lanes [0,H) valid)
    #   rows 5..7  = zero padding
    out_ref[...] = jnp.zeros((8, LANES), jnp.float32)
    out_ref[0:1, :] = acc_fc
    out_ref[1:2, 0:H] = h0
    out_ref[2:3, 0:H] = h1
    out_ref[3:4, 0:H] = c0
    out_ref[4:5, 0:H] = c1


def init_params(key):
    H, I, T = HIDDEN, INPUT, TRAIN_WINDOW
    k = 1.0 / float(H) ** 0.5
    kfc = 1.0 / float(T * H) ** 0.5
    keys = jax.random.split(key, 10)

    def u(kk, shape, lim):
        return jax.random.uniform(kk, shape, jnp.float32, -lim, lim)

    return {
        "w_ih_l0": u(keys[0], (4 * H, I), k),
        "w_hh_l0": u(keys[1], (4 * H, H), k),
        "b_ih_l0": u(keys[2], (4 * H,), k),
        "b_hh_l0": u(keys[3], (4 * H,), k),
        "w_ih_l1": u(keys[4], (4 * H, H), k),
        "w_hh_l1": u(keys[5], (4 * H, H), k),
        "b_ih_l1": u(keys[6], (4 * H,), k),
        "b_hh_l1": u(keys[7], (4 * H,), k),
        "fc_w": u(keys[8], (FC_OUT, T * H), kfc),
        "fc_b": u(keys[9], (FC_OUT,), kfc),
    }


def pack_params(params):
    """One-time packing (run OUTSIDE the per-call jitted path).

    Packs every matmul weight into one bf16, 128-lane slab:
      [0, I)         : w_ih_l0^T               (I, 4H)
      [I, I+H)       : w_hh_l0^T               (H, 4H)
      [I+H, I+2H)    : w_ih_l1^T               (H, 4H)
      [I+2H, I+3H)   : w_hh_l1^T               (H, 4H)
      [I+3H, end)    : fc_w^T padded 72->128   (T*H, 128)
    The i/f/o gate columns of the LSTM weights/biases are pre-scaled by 0.5 so
    the kernel can compute sigmoid via one tanh pass (exact power-of-2 scale).
    """
    H = HIDDEN
    # gate order i, f, g, o -> scale i/f/o columns by 0.5, g columns by 1.
    scale = jnp.concatenate(
        [jnp.full((1, H), 0.5, jnp.float32),
         jnp.full((1, H), 0.5, jnp.float32),
         jnp.ones((1, H), jnp.float32),
         jnp.full((1, H), 0.5, jnp.float32)], axis=1)            # (1, 4H)

    w_fc_pad = jnp.pad(params["fc_w"].T, ((0, 0), (0, LANES - FC_OUT)))
    w_slab = jnp.concatenate(
        [params["w_ih_l0"].T * scale,
         params["w_hh_l0"].T * scale,
         params["w_ih_l1"].T * scale,
         params["w_hh_l1"].T * scale,
         w_fc_pad], axis=0).astype(jnp.bfloat16)                 # (360, 128)

    # Bias slab (f32): row0 = b_l0 (prescaled), row1 = b_l1 (prescaled),
    # row2 = fc bias (padded, used as the FC accumulator init).
    b0 = (params["b_ih_l0"] + params["b_hh_l0"]).reshape(1, 4 * H) * scale
    b1 = (params["b_ih_l1"] + params["b_hh_l1"]).reshape(1, 4 * H) * scale
    bfc = jnp.pad(params["fc_b"].reshape(1, FC_OUT),
                  ((0, 0), (0, LANES - FC_OUT)))
    b_slab = jnp.concatenate([b0, b1, bfc], axis=0)              # (3, 128)
    return w_slab, b_slab


@jax.jit
def lstm_forward(x, w_slab, b_slab):
    """x: (1, TRAIN_WINDOW, INPUT) f32; slabs from pack_params.
    Returns (out, (h_n, c_n))."""
    T, I, H = TRAIN_WINDOW, INPUT, HIDDEN

    x2 = x.reshape(T, I).astype(jnp.bfloat16)

    vmem = pl.BlockSpec(memory_space=pltpu.MemorySpace.VMEM)
    res = pl.pallas_call(
        lstm_kernel,
        out_shape=jax.ShapeDtypeStruct((8, LANES), jnp.float32),
        in_specs=[vmem, vmem, vmem],
        out_specs=vmem,
    )(x2, w_slab, b_slab)

    out = res[0:1, 0:FC_OUT].reshape(-1, NUM_TIMESTEP_PREV, OUTPUT_SIZE,
                                     NUM_CLASSES)
    h_n = res[1:3, 0:H].reshape(NUM_LAYERS, 1, H)
    c_n = res[3:5, 0:H].reshape(NUM_LAYERS, 1, H)
    return out, (h_n, c_n)


if __name__ == "__main__":
    key = jax.random.PRNGKey(0)
    pkey, xkey = jax.random.split(key)
    params = init_params(pkey)

    # One-time weight packing, hoisted off the per-call latency path.
    w_slab, b_slab = pack_params(params)
    jax.block_until_ready((w_slab, b_slab))

    # PyTorch forward assumes batch=1 (reshape to (1, train_window*hidden)).
    # TODO(synk): on v7x, batching >1 independent windows via a parallel grid
    # dimension would engage the second TensorCore; not applicable at batch=1.
    x = jax.random.normal(xkey, (1, TRAIN_WINDOW, INPUT), jnp.float32)

    out, (h_n, c_n) = lstm_forward(x, w_slab, b_slab)
    jax.block_until_ready((out, h_n, c_n))

    assert out.shape == (1, NUM_TIMESTEP_PREV, OUTPUT_SIZE, NUM_CLASSES)
    assert h_n.shape == (NUM_LAYERS, 1, HIDDEN)
    assert c_n.shape == (NUM_LAYERS, 1, HIDDEN)
    print("KERNEL_OK")
</pallas_src>

<mosaic_0001>
module attributes {stable_mosaic.version = 11 : i64} {
  func.func @lstm_kernel(%arg0: memref<8x8xbf16, #tpu.memory_space<vmem>>, %arg1: memref<360x128xbf16, #tpu.memory_space<vmem>>, %arg2: memref<3x128xf32, #tpu.memory_space<vmem>>, %arg3: memref<8x128xf32, #tpu.memory_space<vmem>>) attributes {dimension_semantics = [], scalar_prefetch = 0 : i64, scratch_operands = 0 : i64, tpu.core_type = #tpu.core_type<tc>} {
    %c0 = arith.constant 0 : index
    %c0_0 = arith.constant 0 : index
    %0 = vector.load %arg1[%c0, %c0_0] : memref<360x128xbf16, #tpu.memory_space<vmem>>, vector<8x128xbf16>
    %c8 = arith.constant 8 : index
    %c0_1 = arith.constant 0 : index
    %1 = vector.load %arg1[%c8, %c0_1] : memref<360x128xbf16, #tpu.memory_space<vmem>>, vector<32x128xbf16>
    %c40 = arith.constant 40 : index
    %c0_2 = arith.constant 0 : index
    %2 = vector.load %arg1[%c40, %c0_2] : memref<360x128xbf16, #tpu.memory_space<vmem>>, vector<32x128xbf16>
    %c72 = arith.constant 72 : index
    %c0_3 = arith.constant 0 : index
    %3 = vector.load %arg1[%c72, %c0_3] : memref<360x128xbf16, #tpu.memory_space<vmem>>, vector<32x128xbf16>
    %c0_4 = arith.constant 0 : index
    %c0_5 = arith.constant 0 : index
    %4 = vector.load %arg2[%c0_4, %c0_5] : memref<3x128xf32, #tpu.memory_space<vmem>>, vector<1x128xf32>
    %c1 = arith.constant 1 : index
    %c0_6 = arith.constant 0 : index
    %5 = vector.load %arg2[%c1, %c0_6] : memref<3x128xf32, #tpu.memory_space<vmem>>, vector<1x128xf32>
    %c0_7 = arith.constant 0 : index
    %c0_8 = arith.constant 0 : index
    %6 = vector.load %arg0[%c0_7, %c0_8] : memref<8x8xbf16, #tpu.memory_space<vmem>>, vector<8x8xbf16>
    %cst = arith.constant dense<0.000000e+00> : vector<8x128xf32>
    %7 = tpu.matmul %6, %0, %cst {dimension_numbers = #tpu.dot_dimension_numbers<[1], [0], [0], [1], [0, 0, 1, 1], [], []>} : vector<8x8xbf16>, vector<8x128xbf16>, vector<8x128xf32> -> vector<8x128xf32>
    %8 = vector.broadcast %4 : vector<1x128xf32> to vector<8x128xf32>
    %9 = arith.addf %7, %8 : vector<8x128xf32>
    %cst_9 = arith.constant 0.000000e+00 : f32
    %10 = vector.broadcast %cst_9 : f32 to vector<1x32xf32>
    %c2 = arith.constant 2 : index
    %c0_10 = arith.constant 0 : index
    %11 = vector.load %arg2[%c2, %c0_10] : memref<3x128xf32, #tpu.memory_space<vmem>>, vector<1x128xf32>
    %12 = arith.truncf %10 : vector<1x32xf32> to vector<1x32xbf16>
    %13 = vector.extract_strided_slice %9 {offsets = [0, 0], sizes = [1, 128], strides = [1, 1]} : vector<8x128xf32> to vector<1x128xf32>
    %14 = arith.truncf %10 : vector<1x32xf32> to vector<1x32xbf16>
    %cst_11 = arith.constant dense<0.000000e+00> : vector<1x128xf32>
    %15 = tpu.matmul %14, %1, %cst_11 {dimension_numbers = #tpu.dot_dimension_numbers<[1], [0], [0], [1], [0, 0, 1, 1], [], []>} : vector<1x32xbf16>, vector<32x128xbf16>, vector<1x128xf32> -> vector<1x128xf32>
    %16 = arith.addf %13, %15 : vector<1x128xf32>
    %17 = math.tanh %16 : vector<1x128xf32>
    %18 = vector.extract_strided_slice %17 {offsets = [0, 0], sizes = [1, 32], strides = [1, 1]} : vector<1x128xf32> to vector<1x32xf32>
    %cst_12 = arith.constant 1.000000e+00 : f32
    %19 = vector.broadcast %cst_12 : f32 to vector<1x32xf32>
    %20 = arith.addf %18, %19 : vector<1x32xf32>
    %cst_13 = arith.constant 5.000000e-01 : f32
    %21 = vector.broadcast %cst_13 : f32 to vector<1x32xf32>
    %22 = arith.mulf %21, %20 : vector<1x32xf32>
    %23 = vector.extract_strided_slice %17 {offsets = [0, 32], sizes = [1, 32], strides = [1, 1]} : vector<1x128xf32> to vector<1x32xf32>
    %cst_14 = arith.constant 1.000000e+00 : f32
    %24 = vector.broadcast %cst_14 : f32 to vector<1x32xf32>
    %25 = arith.addf %23, %24 : vector<1x32xf32>
    %cst_15 = arith.constant 5.000000e-01 : f32
    %26 = vector.broadcast %cst_15 : f32 to vector<1x32xf32>
    %27 = arith.mulf %26, %25 : vector<1x32xf32>
    %28 = vector.extract_strided_slice %17 {offsets = [0, 64], sizes = [1, 32], strides = [1, 1]} : vector<1x128xf32> to vector<1x32xf32>
    %29 = vector.extract_strided_slice %17 {offsets = [0, 96], sizes = [1, 32], strides = [1, 1]} : vector<1x128xf32> to vector<1x32xf32>
    %cst_16 = arith.constant 1.000000e+00 : f32
    %30 = vector.broadcast %cst_16 : f32 to vector<1x32xf32>
    %31 = arith.addf %29, %30 : vector<1x32xf32>
    %cst_17 = arith.constant 5.000000e-01 : f32
    %32 = vector.broadcast %cst_17 : f32 to vector<1x32xf32>
    %33 = arith.mulf %32, %31 : vector<1x32xf32>
    %34 = arith.mulf %27, %10 : vector<1x32xf32>
    %35 = arith.mulf %22, %28 : vector<1x32xf32>
    %36 = arith.addf %34, %35 : vector<1x32xf32>
    %37 = math.tanh %36 : vector<1x32xf32>
    %38 = arith.mulf %33, %37 : vector<1x32xf32>
    %39 = arith.truncf %38 : vector<1x32xf32> to vector<1x32xbf16>
    %cst_18 = arith.constant dense<0.000000e+00> : vector<1x128xf32>
    %40 = tpu.matmul %39, %2, %cst_18 {dimension_numbers = #tpu.dot_dimension_numbers<[1], [0], [0], [1], [0, 0, 1, 1], [], []>} : vector<1x32xbf16>, vector<32x128xbf16>, vector<1x128xf32> -> vector<1x128xf32>
    %cst_19 = arith.constant dense<0.000000e+00> : vector<1x128xf32>
    %41 = tpu.matmul %12, %3, %cst_19 {dimension_numbers = #tpu.dot_dimension_numbers<[1], [0], [0], [1], [0, 0, 1, 1], [], []>} : vector<1x32xbf16>, vector<32x128xbf16>, vector<1x128xf32> -> vector<1x128xf32>
    %42 = arith.addf %40, %41 : vector<1x128xf32>
    %43 = arith.addf %42, %5 : vector<1x128xf32>
    %44 = math.tanh %43 : vector<1x128xf32>
    %45 = vector.extract_strided_slice %44 {offsets = [0, 0], sizes = [1, 32], strides = [1, 1]} : vector<1x128xf32> to vector<1x32xf32>
    %cst_20 = arith.constant 1.000000e+00 : f32
    %46 = vector.broadcast %cst_20 : f32 to vector<1x32xf32>
    %47 = arith.addf %45, %46 : vector<1x32xf32>
    %cst_21 = arith.constant 5.000000e-01 : f32
    %48 = vector.broadcast %cst_21 : f32 to vector<1x32xf32>
    %49 = arith.mulf %48, %47 : vector<1x32xf32>
    %50 = vector.extract_strided_slice %44 {offsets = [0, 32], sizes = [1, 32], strides = [1, 1]} : vector<1x128xf32> to vector<1x32xf32>
    %cst_22 = arith.constant 1.000000e+00 : f32
    %51 = vector.broadcast %cst_22 : f32 to vector<1x32xf32>
    %52 = arith.addf %50, %51 : vector<1x32xf32>
    %cst_23 = arith.constant 5.000000e-01 : f32
    %53 = vector.broadcast %cst_23 : f32 to vector<1x32xf32>
    %54 = arith.mulf %53, %52 : vector<1x32xf32>
    %55 = vector.extract_strided_slice %44 {offsets = [0, 64], sizes = [1, 32], strides = [1, 1]} : vector<1x128xf32> to vector<1x32xf32>
    %56 = vector.extract_strided_slice %44 {offsets = [0, 96], sizes = [1, 32], strides = [1, 1]} : vector<1x128xf32> to vector<1x32xf32>
    %cst_24 = arith.constant 1.000000e+00 : f32
    %57 = vector.broadcast %cst_24 : f32 to vector<1x32xf32>
    %58 = arith.addf %56, %57 : vector<1x32xf32>
    %cst_25 = arith.constant 5.000000e-01 : f32
    %59 = vector.broadcast %cst_25 : f32 to vector<1x32xf32>
    %60 = arith.mulf %59, %58 : vector<1x32xf32>
    %61 = arith.mulf %54, %10 : vector<1x32xf32>
    %62 = arith.mulf %49, %55 : vector<1x32xf32>
    %63 = arith.addf %61, %62 : vector<1x32xf32>
    %64 = math.tanh %63 : vector<1x32xf32>
    %65 = arith.mulf %60, %64 : vector<1x32xf32>
    %66 = arith.truncf %65 : vector<1x32xf32> to vector<1x32xbf16>
    %c104 = arith.constant 104 : index
    %c0_26 = arith.constant 0 : index
    %67 = vector.load %arg1[%c104, %c0_26] : memref<360x128xbf16, #tpu.memory_space<vmem>>, vector<32x128xbf16>
    %cst_27 = arith.constant dense<0.000000e+00> : vector<1x128xf32>
    %68 = tpu.matmul %66, %67, %cst_27 {dimension_numbers = #tpu.dot_dimension_numbers<[1], [0], [0], [1], [0, 0, 1, 1], [], []>} : vector<1x32xbf16>, vector<32x128xbf16>, vector<1x128xf32> -> vector<1x128xf32>
    %69 = arith.addf %11, %68 : vector<1x128xf32>
    %70 = arith.truncf %65 : vector<1x32xf32> to vector<1x32xbf16>
    %71 = vector.extract_strided_slice %9 {offsets = [1, 0], sizes = [1, 128], strides = [1, 1]} : vector<8x128xf32> to vector<1x128xf32>
    %72 = arith.truncf %38 : vector<1x32xf32> to vector<1x32xbf16>
    %cst_28 = arith.constant dense<0.000000e+00> : vector<1x128xf32>
    %73 = tpu.matmul %72, %1, %cst_28 {dimension_numbers = #tpu.dot_dimension_numbers<[1], [0], [0], [1], [0, 0, 1, 1], [], []>} : vector<1x32xbf16>, vector<32x128xbf16>, vector<1x128xf32> -> vector<1x128xf32>
    %74 = arith.addf %71, %73 : vector<1x128xf32>
    %75 = math.tanh %74 : vector<1x128xf32>
    %76 = vector.extract_strided_slice %75 {offsets = [0, 0], sizes = [1, 32], strides = [1, 1]} : vector<1x128xf32> to vector<1x32xf32>
    %cst_29 = arith.constant 1.000000e+00 : f32
    %77 = vector.broadcast %cst_29 : f32 to vector<1x32xf32>
    %78 = arith.addf %76, %77 : vector<1x32xf32>
    %cst_30 = arith.constant 5.000000e-01 : f32
    %79 = vector.broadcast %cst_30 : f32 to vector<1x32xf32>
    %80 = arith.mulf %79, %78 : vector<1x32xf32>
    %81 = vector.extract_strided_slice %75 {offsets = [0, 32], sizes = [1, 32], strides = [1, 1]} : vector<1x128xf32> to vector<1x32xf32>
    %cst_31 = arith.constant 1.000000e+00 : f32
    %82 = vector.broadcast %cst_31 : f32 to vector<1x32xf32>
    %83 = arith.addf %81, %82 : vector<1x32xf32>
    %cst_32 = arith.constant 5.000000e-01 : f32
    %84 = vector.broadcast %cst_32 : f32 to vector<1x32xf32>
    %85 = arith.mulf %84, %83 : vector<1x32xf32>
    %86 = vector.extract_strided_slice %75 {offsets = [0, 64], sizes = [1, 32], strides = [1, 1]} : vector<1x128xf32> to vector<1x32xf32>
    %87 = vector.extract_strided_slice %75 {offsets = [0, 96], sizes = [1, 32], strides = [1, 1]} : vector<1x128xf32> to vector<1x32xf32>
    %cst_33 = arith.constant 1.000000e+00 : f32
    %88 = vector.broadcast %cst_33 : f32 to vector<1x32xf32>
    %89 = arith.addf %87, %88 : vector<1x32xf32>
    %cst_34 = arith.constant 5.000000e-01 : f32
    %90 = vector.broadcast %cst_34 : f32 to vector<1x32xf32>
    %91 = arith.mulf %90, %89 : vector<1x32xf32>
    %92 = arith.mulf %85, %36 : vector<1x32xf32>
    %93 = arith.mulf %80, %86 : vector<1x32xf32>
    %94 = arith.addf %92, %93 : vector<1x32xf32>
    %95 = math.tanh %94 : vector<1x32xf32>
    %96 = arith.mulf %91, %95 : vector<1x32xf32>
    %97 = arith.truncf %96 : vector<1x32xf32> to vector<1x32xbf16>
    %cst_35 = arith.constant dense<0.000000e+00> : vector<1x128xf32>
    %98 = tpu.matmul %97, %2, %cst_35 {dimension_numbers = #tpu.dot_dimension_numbers<[1], [0], [0], [1], [0, 0, 1, 1], [], []>} : vector<1x32xbf16>, vector<32x128xbf16>, vector<1x128xf32> -> vector<1x128xf32>
    %cst_36 = arith.constant dense<0.000000e+00> : vector<1x128xf32>
    %99 = tpu.matmul %70, %3, %cst_36 {dimension_numbers = #tpu.dot_dimension_numbers<[1], [0], [0], [1], [0, 0, 1, 1], [], []>} : vector<1x32xbf16>, vector<32x128xbf16>, vector<1x128xf32> -> vector<1x128xf32>
    %100 = arith.addf %98, %99 : vector<1x128xf32>
    %101 = arith.addf %100, %5 : vector<1x128xf32>
    %102 = math.tanh %101 : vector<1x128xf32>
    %103 = vector.extract_strided_slice %102 {offsets = [0, 0], sizes = [1, 32], strides = [1, 1]} : vector<1x128xf32> to vector<1x32xf32>
    %cst_37 = arith.constant 1.000000e+00 : f32
    %104 = vector.broadcast %cst_37 : f32 to vector<1x32xf32>
    %105 = arith.addf %103, %104 : vector<1x32xf32>
    %cst_38 = arith.constant 5.000000e-01 : f32
    %106 = vector.broadcast %cst_38 : f32 to vector<1x32xf32>
    %107 = arith.mulf %106, %105 : vector<1x32xf32>
    %108 = vector.extract_strided_slice %102 {offsets = [0, 32], sizes = [1, 32], strides = [1, 1]} : vector<1x128xf32> to vector<1x32xf32>
    %cst_39 = arith.constant 1.000000e+00 : f32
    %109 = vector.broadcast %cst_39 : f32 to vector<1x32xf32>
    %110 = arith.addf %108, %109 : vector<1x32xf32>
    %cst_40 = arith.constant 5.000000e-01 : f32
    %111 = vector.broadcast %cst_40 : f32 to vector<1x32xf32>
    %112 = arith.mulf %111, %110 : vector<1x32xf32>
    %113 = vector.extract_strided_slice %102 {offsets = [0, 64], sizes = [1, 32], strides = [1, 1]} : vector<1x128xf32> to vector<1x32xf32>
    %114 = vector.extract_strided_slice %102 {offsets = [0, 96], sizes = [1, 32], strides = [1, 1]} : vector<1x128xf32> to vector<1x32xf32>
    %cst_41 = arith.constant 1.000000e+00 : f32
    %115 = vector.broadcast %cst_41 : f32 to vector<1x32xf32>
    %116 = arith.addf %114, %115 : vector<1x32xf32>
    %cst_42 = arith.constant 5.000000e-01 : f32
    %117 = vector.broadcast %cst_42 : f32 to vector<1x32xf32>
    %118 = arith.mulf %117, %116 : vector<1x32xf32>
    %119 = arith.mulf %112, %63 : vector<1x32xf32>
    %120 = arith.mulf %107, %113 : vector<1x32xf32>
    %121 = arith.addf %119, %120 : vector<1x32xf32>
    %122 = math.tanh %121 : vector<1x32xf32>
    %123 = arith.mulf %118, %122 : vector<1x32xf32>
    %124 = arith.truncf %123 : vector<1x32xf32> to vector<1x32xbf16>
    %c136 = arith.constant 136 : index
    %c0_43 = arith.constant 0 : index
    %125 = vector.load %arg1[%c136, %c0_43] : memref<360x128xbf16, #tpu.memory_space<vmem>>, vector<32x128xbf16>
    %cst_44 = arith.constant dense<0.000000e+00> : vector<1x128xf32>
    %126 = tpu.matmul %124, %125, %cst_44 {dimension_numbers = #tpu.dot_dimension_numbers<[1], [0], [0], [1], [0, 0, 1, 1], [], []>} : vector<1x32xbf16>, vector<32x128xbf16>, vector<1x128xf32> -> vector<1x128xf32>
    %127 = arith.addf %69, %126 : vector<1x128xf32>
    %128 = arith.truncf %123 : vector<1x32xf32> to vector<1x32xbf16>
    %129 = vector.extract_strided_slice %9 {offsets = [2, 0], sizes = [1, 128], strides = [1, 1]} : vector<8x128xf32> to vector<1x128xf32>
    %130 = arith.truncf %96 : vector<1x32xf32> to vector<1x32xbf16>
    %cst_45 = arith.constant dense<0.000000e+00> : vector<1x128xf32>
    %131 = tpu.matmul %130, %1, %cst_45 {dimension_numbers = #tpu.dot_dimension_numbers<[1], [0], [0], [1], [0, 0, 1, 1], [], []>} : vector<1x32xbf16>, vector<32x128xbf16>, vector<1x128xf32> -> vector<1x128xf32>
    %132 = arith.addf %129, %131 : vector<1x128xf32>
    %133 = math.tanh %132 : vector<1x128xf32>
    %134 = vector.extract_strided_slice %133 {offsets = [0, 0], sizes = [1, 32], strides = [1, 1]} : vector<1x128xf32> to vector<1x32xf32>
    %cst_46 = arith.constant 1.000000e+00 : f32
    %135 = vector.broadcast %cst_46 : f32 to vector<1x32xf32>
    %136 = arith.addf %134, %135 : vector<1x32xf32>
    %cst_47 = arith.constant 5.000000e-01 : f32
    %137 = vector.broadcast %cst_47 : f32 to vector<1x32xf32>
    %138 = arith.mulf %137, %136 : vector<1x32xf32>
    %139 = vector.extract_strided_slice %133 {offsets = [0, 32], sizes = [1, 32], strides = [1, 1]} : vector<1x128xf32> to vector<1x32xf32>
    %cst_48 = arith.constant 1.000000e+00 : f32
    %140 = vector.broadcast %cst_48 : f32 to vector<1x32xf32>
    %141 = arith.addf %139, %140 : vector<1x32xf32>
    %cst_49 = arith.constant 5.000000e-01 : f32
    %142 = vector.broadcast %cst_49 : f32 to vector<1x32xf32>
    %143 = arith.mulf %142, %141 : vector<1x32xf32>
    %144 = vector.extract_strided_slice %133 {offsets = [0, 64], sizes = [1, 32], strides = [1, 1]} : vector<1x128xf32> to vector<1x32xf32>
    %145 = vector.extract_strided_slice %133 {offsets = [0, 96], sizes = [1, 32], strides = [1, 1]} : vector<1x128xf32> to vector<1x32xf32>
    %cst_50 = arith.constant 1.000000e+00 : f32
    %146 = vector.broadcast %cst_50 : f32 to vector<1x32xf32>
    %147 = arith.addf %145, %146 : vector<1x32xf32>
    %cst_51 = arith.constant 5.000000e-01 : f32
    %148 = vector.broadcast %cst_51 : f32 to vector<1x32xf32>
    %149 = arith.mulf %148, %147 : vector<1x32xf32>
    %150 = arith.mulf %143, %94 : vector<1x32xf32>
    %151 = arith.mulf %138, %144 : vector<1x32xf32>
    %152 = arith.addf %150, %151 : vector<1x32xf32>
    %153 = math.tanh %152 : vector<1x32xf32>
    %154 = arith.mulf %149, %153 : vector<1x32xf32>
    %155 = arith.truncf %154 : vector<1x32xf32> to vector<1x32xbf16>
    %cst_52 = arith.constant dense<0.000000e+00> : vector<1x128xf32>
    %156 = tpu.matmul %155, %2, %cst_52 {dimension_numbers = #tpu.dot_dimension_numbers<[1], [0], [0], [1], [0, 0, 1, 1], [], []>} : vector<1x32xbf16>, vector<32x128xbf16>, vector<1x128xf32> -> vector<1x128xf32>
    %cst_53 = arith.constant dense<0.000000e+00> : vector<1x128xf32>
    %157 = tpu.matmul %128, %3, %cst_53 {dimension_numbers = #tpu.dot_dimension_numbers<[1], [0], [0], [1], [0, 0, 1, 1], [], []>} : vector<1x32xbf16>, vector<32x128xbf16>, vector<1x128xf32> -> vector<1x128xf32>
    %158 = arith.addf %156, %157 : vector<1x128xf32>
    %159 = arith.addf %158, %5 : vector<1x128xf32>
    %160 = math.tanh %159 : vector<1x128xf32>
    %161 = vector.extract_strided_slice %160 {offsets = [0, 0], sizes = [1, 32], strides = [1, 1]} : vector<1x128xf32> to vector<1x32xf32>
    %cst_54 = arith.constant 1.000000e+00 : f32
    %162 = vector.broadcast %cst_54 : f32 to vector<1x32xf32>
    %163 = arith.addf %161, %162 : vector<1x32xf32>
    %cst_55 = arith.constant 5.000000e-01 : f32
    %164 = vector.broadcast %cst_55 : f32 to vector<1x32xf32>
    %165 = arith.mulf %164, %163 : vector<1x32xf32>
    %166 = vector.extract_strided_slice %160 {offsets = [0, 32], sizes = [1, 32], strides = [1, 1]} : vector<1x128xf32> to vector<1x32xf32>
    %cst_56 = arith.constant 1.000000e+00 : f32
    %167 = vector.broadcast %cst_56 : f32 to vector<1x32xf32>
    %168 = arith.addf %166, %167 : vector<1x32xf32>
    %cst_57 = arith.constant 5.000000e-01 : f32
    %169 = vector.broadcast %cst_57 : f32 to vector<1x32xf32>
    %170 = arith.mulf %169, %168 : vector<1x32xf32>
    %171 = vector.extract_strided_slice %160 {offsets = [0, 64], sizes = [1, 32], strides = [1, 1]} : vector<1x128xf32> to vector<1x32xf32>
    %172 = vector.extract_strided_slice %160 {offsets = [0, 96], sizes = [1, 32], strides = [1, 1]} : vector<1x128xf32> to vector<1x32xf32>
    %cst_58 = arith.constant 1.000000e+00 : f32
    %173 = vector.broadcast %cst_58 : f32 to vector<1x32xf32>
    %174 = arith.addf %172, %173 : vector<1x32xf32>
    %cst_59 = arith.constant 5.000000e-01 : f32
    %175 = vector.broadcast %cst_59 : f32 to vector<1x32xf32>
    %176 = arith.mulf %175, %174 : vector<1x32xf32>
    %177 = arith.mulf %170, %121 : vector<1x32xf32>
    %178 = arith.mulf %165, %171 : vector<1x32xf32>
    %179 = arith.addf %177, %178 : vector<1x32xf32>
    %180 = math.tanh %179 : vector<1x32xf32>
    %181 = arith.mulf %176, %180 : vector<1x32xf32>
    %182 = arith.truncf %181 : vector<1x32xf32> to vector<1x32xbf16>
    %c168 = arith.constant 168 : index
    %c0_60 = arith.constant 0 : index
    %183 = vector.load %arg1[%c168, %c0_60] : memref<360x128xbf16, #tpu.memory_space<vmem>>, vector<32x128xbf16>
    %cst_61 = arith.constant dense<0.000000e+00> : vector<1x128xf32>
    %184 = tpu.matmul %182, %183, %cst_61 {dimension_numbers = #tpu.dot_dimension_numbers<[1], [0], [0], [1], [0, 0, 1, 1], [], []>} : vector<1x32xbf16>, vector<32x128xbf16>, vector<1x128xf32> -> vector<1x128xf32>
    %185 = arith.addf %127, %184 : vector<1x128xf32>
    %186 = arith.truncf %181 : vector<1x32xf32> to vector<1x32xbf16>
    %187 = vector.extract_strided_slice %9 {offsets = [3, 0], sizes = [1, 128], strides = [1, 1]} : vector<8x128xf32> to vector<1x128xf32>
    %188 = arith.truncf %154 : vector<1x32xf32> to vector<1x32xbf16>
    %cst_62 = arith.constant dense<0.000000e+00> : vector<1x128xf32>
    %189 = tpu.matmul %188, %1, %cst_62 {dimension_numbers = #tpu.dot_dimension_numbers<[1], [0], [0], [1], [0, 0, 1, 1], [], []>} : vector<1x32xbf16>, vector<32x128xbf16>, vector<1x128xf32> -> vector<1x128xf32>
    %190 = arith.addf %187, %189 : vector<1x128xf32>
    %191 = math.tanh %190 : vector<1x128xf32>
    %192 = vector.extract_strided_slice %191 {offsets = [0, 0], sizes = [1, 32], strides = [1, 1]} : vector<1x128xf32> to vector<1x32xf32>
    %cst_63 = arith.constant 1.000000e+00 : f32
    %193 = vector.broadcast %cst_63 : f32 to vector<1x32xf32>
    %194 = arith.addf %192, %193 : vector<1x32xf32>
    %cst_64 = arith.constant 5.000000e-01 : f32
    %195 = vector.broadcast %cst_64 : f32 to vector<1x32xf32>
    %196 = arith.mulf %195, %194 : vector<1x32xf32>
    %197 = vector.extract_strided_slice %191 {offsets = [0, 32], sizes = [1, 32], strides = [1, 1]} : vector<1x128xf32> to vector<1x32xf32>
    %cst_65 = arith.constant 1.000000e+00 : f32
    %198 = vector.broadcast %cst_65 : f32 to vector<1x32xf32>
    %199 = arith.addf %197, %198 : vector<1x32xf32>
    %cst_66 = arith.constant 5.000000e-01 : f32
    %200 = vector.broadcast %cst_66 : f32 to vector<1x32xf32>
    %201 = arith.mulf %200, %199 : vector<1x32xf32>
    %202 = vector.extract_strided_slice %191 {offsets = [0, 64], sizes = [1, 32], strides = [1, 1]} : vector<1x128xf32> to vector<1x32xf32>
    %203 = vector.extract_strided_slice %191 {offsets = [0, 96], sizes = [1, 32], strides = [1, 1]} : vector<1x128xf32> to vector<1x32xf32>
    %cst_67 = arith.constant 1.000000e+00 : f32
    %204 = vector.broadcast %cst_67 : f32 to vector<1x32xf32>
    %205 = arith.addf %203, %204 : vector<1x32xf32>
    %cst_68 = arith.constant 5.000000e-01 : f32
    %206 = vector.broadcast %cst_68 : f32 to vector<1x32xf32>
    %207 = arith.mulf %206, %205 : vector<1x32xf32>
    %208 = arith.mulf %201, %152 : vector<1x32xf32>
    %209 = arith.mulf %196, %202 : vector<1x32xf32>
    %210 = arith.addf %208, %209 : vector<1x32xf32>
    %211 = math.tanh %210 : vector<1x32xf32>
    %212 = arith.mulf %207, %211 : vector<1x32xf32>
    %213 = arith.truncf %212 : vector<1x32xf32> to vector<1x32xbf16>
    %cst_69 = arith.constant dense<0.000000e+00> : vector<1x128xf32>
    %214 = tpu.matmul %213, %2, %cst_69 {dimension_numbers = #tpu.dot_dimension_numbers<[1], [0], [0], [1], [0, 0, 1, 1], [], []>} : vector<1x32xbf16>, vector<32x128xbf16>, vector<1x128xf32> -> vector<1x128xf32>
    %cst_70 = arith.constant dense<0.000000e+00> : vector<1x128xf32>
    %215 = tpu.matmul %186, %3, %cst_70 {dimension_numbers = #tpu.dot_dimension_numbers<[1], [0], [0], [1], [0, 0, 1, 1], [], []>} : vector<1x32xbf16>, vector<32x128xbf16>, vector<1x128xf32> -> vector<1x128xf32>
    %216 = arith.addf %214, %215 : vector<1x128xf32>
    %217 = arith.addf %216, %5 : vector<1x128xf32>
    %218 = math.tanh %217 : vector<1x128xf32>
    %219 = vector.extract_strided_slice %218 {offsets = [0, 0], sizes = [1, 32], strides = [1, 1]} : vector<1x128xf32> to vector<1x32xf32>
    %cst_71 = arith.constant 1.000000e+00 : f32
    %220 = vector.broadcast %cst_71 : f32 to vector<1x32xf32>
    %221 = arith.addf %219, %220 : vector<1x32xf32>
    %cst_72 = arith.constant 5.000000e-01 : f32
    %222 = vector.broadcast %cst_72 : f32 to vector<1x32xf32>
    %223 = arith.mulf %222, %221 : vector<1x32xf32>
    %224 = vector.extract_strided_slice %218 {offsets = [0, 32], sizes = [1, 32], strides = [1, 1]} : vector<1x128xf32> to vector<1x32xf32>
    %cst_73 = arith.constant 1.000000e+00 : f32
    %225 = vector.broadcast %cst_73 : f32 to vector<1x32xf32>
    %226 = arith.addf %224, %225 : vector<1x32xf32>
    %cst_74 = arith.constant 5.000000e-01 : f32
    %227 = vector.broadcast %cst_74 : f32 to vector<1x32xf32>
    %228 = arith.mulf %227, %226 : vector<1x32xf32>
    %229 = vector.extract_strided_slice %218 {offsets = [0, 64], sizes = [1, 32], strides = [1, 1]} : vector<1x128xf32> to vector<1x32xf32>
    %230 = vector.extract_strided_slice %218 {offsets = [0, 96], sizes = [1, 32], strides = [1, 1]} : vector<1x128xf32> to vector<1x32xf32>
    %cst_75 = arith.constant 1.000000e+00 : f32
    %231 = vector.broadcast %cst_75 : f32 to vector<1x32xf32>
    %232 = arith.addf %230, %231 : vector<1x32xf32>
    %cst_76 = arith.constant 5.000000e-01 : f32
    %233 = vector.broadcast %cst_76 : f32 to vector<1x32xf32>
    %234 = arith.mulf %233, %232 : vector<1x32xf32>
    %235 = arith.mulf %228, %179 : vector<1x32xf32>
    %236 = arith.mulf %223, %229 : vector<1x32xf32>
    %237 = arith.addf %235, %236 : vector<1x32xf32>
    %238 = math.tanh %237 : vector<1x32xf32>
    %239 = arith.mulf %234, %238 : vector<1x32xf32>
    %240 = arith.truncf %239 : vector<1x32xf32> to vector<1x32xbf16>
    %c200 = arith.constant 200 : index
    %c0_77 = arith.constant 0 : index
    %241 = vector.load %arg1[%c200, %c0_77] : memref<360x128xbf16, #tpu.memory_space<vmem>>, vector<32x128xbf16>
    %cst_78 = arith.constant dense<0.000000e+00> : vector<1x128xf32>
    %242 = tpu.matmul %240, %241, %cst_78 {dimension_numbers = #tpu.dot_dimension_numbers<[1], [0], [0], [1], [0, 0, 1, 1], [], []>} : vector<1x32xbf16>, vector<32x128xbf16>, vector<1x128xf32> -> vector<1x128xf32>
    %243 = arith.addf %185, %242 : vector<1x128xf32>
    %244 = arith.truncf %239 : vector<1x32xf32> to vector<1x32xbf16>
    %245 = vector.extract_strided_slice %9 {offsets = [4, 0], sizes = [1, 128], strides = [1, 1]} : vector<8x128xf32> to vector<1x128xf32>
    %246 = arith.truncf %212 : vector<1x32xf32> to vector<1x32xbf16>
    %cst_79 = arith.constant dense<0.000000e+00> : vector<1x128xf32>
    %247 = tpu.matmul %246, %1, %cst_79 {dimension_numbers = #tpu.dot_dimension_numbers<[1], [0], [0], [1], [0, 0, 1, 1], [], []>} : vector<1x32xbf16>, vector<32x128xbf16>, vector<1x128xf32> -> vector<1x128xf32>
    %248 = arith.addf %245, %247 : vector<1x128xf32>
    %249 = math.tanh %248 : vector<1x128xf32>
    %250 = vector.extract_strided_slice %249 {offsets = [0, 0], sizes = [1, 32], strides = [1, 1]} : vector<1x128xf32> to vector<1x32xf32>
    %cst_80 = arith.constant 1.000000e+00 : f32
    %251 = vector.broadcast %cst_80 : f32 to vector<1x32xf32>
    %252 = arith.addf %250, %251 : vector<1x32xf32>
    %cst_81 = arith.constant 5.000000e-01 : f32
    %253 = vector.broadcast %cst_81 : f32 to vector<1x32xf32>
    %254 = arith.mulf %253, %252 : vector<1x32xf32>
    %255 = vector.extract_strided_slice %249 {offsets = [0, 32], sizes = [1, 32], strides = [1, 1]} : vector<1x128xf32> to vector<1x32xf32>
    %cst_82 = arith.constant 1.000000e+00 : f32
    %256 = vector.broadcast %cst_82 : f32 to vector<1x32xf32>
    %257 = arith.addf %255, %256 : vector<1x32xf32>
    %cst_83 = arith.constant 5.000000e-01 : f32
    %258 = vector.broadcast %cst_83 : f32 to vector<1x32xf32>
    %259 = arith.mulf %258, %257 : vector<1x32xf32>
    %260 = vector.extract_strided_slice %249 {offsets = [0, 64], sizes = [1, 32], strides = [1, 1]} : vector<1x128xf32> to vector<1x32xf32>
    %261 = vector.extract_strided_slice %249 {offsets = [0, 96], sizes = [1, 32], strides = [1, 1]} : vector<1x128xf32> to vector<1x32xf32>
    %cst_84 = arith.constant 1.000000e+00 : f32
    %262 = vector.broadcast %cst_84 : f32 to vector<1x32xf32>
    %263 = arith.addf %261, %262 : vector<1x32xf32>
    %cst_85 = arith.constant 5.000000e-01 : f32
    %264 = vector.broadcast %cst_85 : f32 to vector<1x32xf32>
    %265 = arith.mulf %264, %263 : vector<1x32xf32>
    %266 = arith.mulf %259, %210 : vector<1x32xf32>
    %267 = arith.mulf %254, %260 : vector<1x32xf32>
    %268 = arith.addf %266, %267 : vector<1x32xf32>
    %269 = math.tanh %268 : vector<1x32xf32>
    %270 = arith.mulf %265, %269 : vector<1x32xf32>
    %271 = arith.truncf %270 : vector<1x32xf32> to vector<1x32xbf16>
    %cst_86 = arith.constant dense<0.000000e+00> : vector<1x128xf32>
    %272 = tpu.matmul %271, %2, %cst_86 {dimension_numbers = #tpu.dot_dimension_numbers<[1], [0], [0], [1], [0, 0, 1, 1], [], []>} : vector<1x32xbf16>, vector<32x128xbf16>, vector<1x128xf32> -> vector<1x128xf32>
    %cst_87 = arith.constant dense<0.000000e+00> : vector<1x128xf32>
    %273 = tpu.matmul %244, %3, %cst_87 {dimension_numbers = #tpu.dot_dimension_numbers<[1], [0], [0], [1], [0, 0, 1, 1], [], []>} : vector<1x32xbf16>, vector<32x128xbf16>, vector<1x128xf32> -> vector<1x128xf32>
    %274 = arith.addf %272, %273 : vector<1x128xf32>
    %275 = arith.addf %274, %5 : vector<1x128xf32>
    %276 = math.tanh %275 : vector<1x128xf32>
    %277 = vector.extract_strided_slice %276 {offsets = [0, 0], sizes = [1, 32], strides = [1, 1]} : vector<1x128xf32> to vector<1x32xf32>
    %cst_88 = arith.constant 1.000000e+00 : f32
    %278 = vector.broadcast %cst_88 : f32 to vector<1x32xf32>
    %279 = arith.addf %277, %278 : vector<1x32xf32>
    %cst_89 = arith.constant 5.000000e-01 : f32
    %280 = vector.broadcast %cst_89 : f32 to vector<1x32xf32>
    %281 = arith.mulf %280, %279 : vector<1x32xf32>
    %282 = vector.extract_strided_slice %276 {offsets = [0, 32], sizes = [1, 32], strides = [1, 1]} : vector<1x128xf32> to vector<1x32xf32>
    %cst_90 = arith.constant 1.000000e+00 : f32
    %283 = vector.broadcast %cst_90 : f32 to vector<1x32xf32>
    %284 = arith.addf %282, %283 : vector<1x32xf32>
    %cst_91 = arith.constant 5.000000e-01 : f32
    %285 = vector.broadcast %cst_91 : f32 to vector<1x32xf32>
    %286 = arith.mulf %285, %284 : vector<1x32xf32>
    %287 = vector.extract_strided_slice %276 {offsets = [0, 64], sizes = [1, 32], strides = [1, 1]} : vector<1x128xf32> to vector<1x32xf32>
    %288 = vector.extract_strided_slice %276 {offsets = [0, 96], sizes = [1, 32], strides = [1, 1]} : vector<1x128xf32> to vector<1x32xf32>
    %cst_92 = arith.constant 1.000000e+00 : f32
    %289 = vector.broadcast %cst_92 : f32 to vector<1x32xf32>
    %290 = arith.addf %288, %289 : vector<1x32xf32>
    %cst_93 = arith.constant 5.000000e-01 : f32
    %291 = vector.broadcast %cst_93 : f32 to vector<1x32xf32>
    %292 = arith.mulf %291, %290 : vector<1x32xf32>
    %293 = arith.mulf %286, %237 : vector<1x32xf32>
    %294 = arith.mulf %281, %287 : vector<1x32xf32>
    %295 = arith.addf %293, %294 : vector<1x32xf32>
    %296 = math.tanh %295 : vector<1x32xf32>
    %297 = arith.mulf %292, %296 : vector<1x32xf32>
    %298 = arith.truncf %297 : vector<1x32xf32> to vector<1x32xbf16>
    %c232 = arith.constant 232 : index
    %c0_94 = arith.constant 0 : index
    %299 = vector.load %arg1[%c232, %c0_94] : memref<360x128xbf16, #tpu.memory_space<vmem>>, vector<32x128xbf16>
    %cst_95 = arith.constant dense<0.000000e+00> : vector<1x128xf32>
    %300 = tpu.matmul %298, %299, %cst_95 {dimension_numbers = #tpu.dot_dimension_numbers<[1], [0], [0], [1], [0, 0, 1, 1], [], []>} : vector<1x32xbf16>, vector<32x128xbf16>, vector<1x128xf32> -> vector<1x128xf32>
    %301 = arith.addf %243, %300 : vector<1x128xf32>
    %302 = arith.truncf %297 : vector<1x32xf32> to vector<1x32xbf16>
    %303 = vector.extract_strided_slice %9 {offsets = [5, 0], sizes = [1, 128], strides = [1, 1]} : vector<8x128xf32> to vector<1x128xf32>
    %304 = arith.truncf %270 : vector<1x32xf32> to vector<1x32xbf16>
    %cst_96 = arith.constant dense<0.000000e+00> : vector<1x128xf32>
    %305 = tpu.matmul %304, %1, %cst_96 {dimension_numbers = #tpu.dot_dimension_numbers<[1], [0], [0], [1], [0, 0, 1, 1], [], []>} : vector<1x32xbf16>, vector<32x128xbf16>, vector<1x128xf32> -> vector<1x128xf32>
    %306 = arith.addf %303, %305 : vector<1x128xf32>
    %307 = math.tanh %306 : vector<1x128xf32>
    %308 = vector.extract_strided_slice %307 {offsets = [0, 0], sizes = [1, 32], strides = [1, 1]} : vector<1x128xf32> to vector<1x32xf32>
    %cst_97 = arith.constant 1.000000e+00 : f32
    %309 = vector.broadcast %cst_97 : f32 to vector<1x32xf32>
    %310 = arith.addf %308, %309 : vector<1x32xf32>
    %cst_98 = arith.constant 5.000000e-01 : f32
    %311 = vector.broadcast %cst_98 : f32 to vector<1x32xf32>
    %312 = arith.mulf %311, %310 : vector<1x32xf32>
    %313 = vector.extract_strided_slice %307 {offsets = [0, 32], sizes = [1, 32], strides = [1, 1]} : vector<1x128xf32> to vector<1x32xf32>
    %cst_99 = arith.constant 1.000000e+00 : f32
    %314 = vector.broadcast %cst_99 : f32 to vector<1x32xf32>
    %315 = arith.addf %313, %314 : vector<1x32xf32>
    %cst_100 = arith.constant 5.000000e-01 : f32
    %316 = vector.broadcast %cst_100 : f32 to vector<1x32xf32>
    %317 = arith.mulf %316, %315 : vector<1x32xf32>
    %318 = vector.extract_strided_slice %307 {offsets = [0, 64], sizes = [1, 32], strides = [1, 1]} : vector<1x128xf32> to vector<1x32xf32>
    %319 = vector.extract_strided_slice %307 {offsets = [0, 96], sizes = [1, 32], strides = [1, 1]} : vector<1x128xf32> to vector<1x32xf32>
    %cst_101 = arith.constant 1.000000e+00 : f32
    %320 = vector.broadcast %cst_101 : f32 to vector<1x32xf32>
    %321 = arith.addf %319, %320 : vector<1x32xf32>
    %cst_102 = arith.constant 5.000000e-01 : f32
    %322 = vector.broadcast %cst_102 : f32 to vector<1x32xf32>
    %323 = arith.mulf %322, %321 : vector<1x32xf32>
    %324 = arith.mulf %317, %268 : vector<1x32xf32>
    %325 = arith.mulf %312, %318 : vector<1x32xf32>
    %326 = arith.addf %324, %325 : vector<1x32xf32>
    %327 = math.tanh %326 : vector<1x32xf32>
    %328 = arith.mulf %323, %327 : vector<1x32xf32>
    %329 = arith.truncf %328 : vector<1x32xf32> to vector<1x32xbf16>
    %cst_103 = arith.constant dense<0.000000e+00> : vector<1x128xf32>
    %330 = tpu.matmul %329, %2, %cst_103 {dimension_numbers = #tpu.dot_dimension_numbers<[1], [0], [0], [1], [0, 0, 1, 1], [], []>} : vector<1x32xbf16>, vector<32x128xbf16>, vector<1x128xf32> -> vector<1x128xf32>
    %cst_104 = arith.constant dense<0.000000e+00> : vector<1x128xf32>
    %331 = tpu.matmul %302, %3, %cst_104 {dimension_numbers = #tpu.dot_dimension_numbers<[1], [0], [0], [1], [0, 0, 1, 1], [], []>} : vector<1x32xbf16>, vector<32x128xbf16>, vector<1x128xf32> -> vector<1x128xf32>
    %332 = arith.addf %330, %331 : vector<1x128xf32>
    %333 = arith.addf %332, %5 : vector<1x128xf32>
    %334 = math.tanh %333 : vector<1x128xf32>
    %335 = vector.extract_strided_slice %334 {offsets = [0, 0], sizes = [1, 32], strides = [1, 1]} : vector<1x128xf32> to vector<1x32xf32>
    %cst_105 = arith.constant 1.000000e+00 : f32
    %336 = vector.broadcast %cst_105 : f32 to vector<1x32xf32>
    %337 = arith.addf %335, %336 : vector<1x32xf32>
    %cst_106 = arith.constant 5.000000e-01 : f32
    %338 = vector.broadcast %cst_106 : f32 to vector<1x32xf32>
    %339 = arith.mulf %338, %337 : vector<1x32xf32>
    %340 = vector.extract_strided_slice %334 {offsets = [0, 32], sizes = [1, 32], strides = [1, 1]} : vector<1x128xf32> to vector<1x32xf32>
    %cst_107 = arith.constant 1.000000e+00 : f32
    %341 = vector.broadcast %cst_107 : f32 to vector<1x32xf32>
    %342 = arith.addf %340, %341 : vector<1x32xf32>
    %cst_108 = arith.constant 5.000000e-01 : f32
    %343 = vector.broadcast %cst_108 : f32 to vector<1x32xf32>
    %344 = arith.mulf %343, %342 : vector<1x32xf32>
    %345 = vector.extract_strided_slice %334 {offsets = [0, 64], sizes = [1, 32], strides = [1, 1]} : vector<1x128xf32> to vector<1x32xf32>
    %346 = vector.extract_strided_slice %334 {offsets = [0, 96], sizes = [1, 32], strides = [1, 1]} : vector<1x128xf32> to vector<1x32xf32>
    %cst_109 = arith.constant 1.000000e+00 : f32
    %347 = vector.broadcast %cst_109 : f32 to vector<1x32xf32>
    %348 = arith.addf %346, %347 : vector<1x32xf32>
    %cst_110 = arith.constant 5.000000e-01 : f32
    %349 = vector.broadcast %cst_110 : f32 to vector<1x32xf32>
    %350 = arith.mulf %349, %348 : vector<1x32xf32>
    %351 = arith.mulf %344, %295 : vector<1x32xf32>
    %352 = arith.mulf %339, %345 : vector<1x32xf32>
    %353 = arith.addf %351, %352 : vector<1x32xf32>
    %354 = math.tanh %353 : vector<1x32xf32>
    %355 = arith.mulf %350, %354 : vector<1x32xf32>
    %356 = arith.truncf %355 : vector<1x32xf32> to vector<1x32xbf16>
    %c264 = arith.constant 264 : index
    %c0_111 = arith.constant 0 : index
    %357 = vector.load %arg1[%c264, %c0_111] : memref<360x128xbf16, #tpu.memory_space<vmem>>, vector<32x128xbf16>
    %cst_112 = arith.constant dense<0.000000e+00> : vector<1x128xf32>
    %358 = tpu.matmul %356, %357, %cst_112 {dimension_numbers = #tpu.dot_dimension_numbers<[1], [0], [0], [1], [0, 0, 1, 1], [], []>} : vector<1x32xbf16>, vector<32x128xbf16>, vector<1x128xf32> -> vector<1x128xf32>
    %359 = arith.addf %301, %358 : vector<1x128xf32>
    %360 = arith.truncf %355 : vector<1x32xf32> to vector<1x32xbf16>
    %361 = vector.extract_strided_slice %9 {offsets = [6, 0], sizes = [1, 128], strides = [1, 1]} : vector<8x128xf32> to vector<1x128xf32>
    %362 = arith.truncf %328 : vector<1x32xf32> to vector<1x32xbf16>
    %cst_113 = arith.constant dense<0.000000e+00> : vector<1x128xf32>
    %363 = tpu.matmul %362, %1, %cst_113 {dimension_numbers = #tpu.dot_dimension_numbers<[1], [0], [0], [1], [0, 0, 1, 1], [], []>} : vector<1x32xbf16>, vector<32x128xbf16>, vector<1x128xf32> -> vector<1x128xf32>
    %364 = arith.addf %361, %363 : vector<1x128xf32>
    %365 = math.tanh %364 : vector<1x128xf32>
    %366 = vector.extract_strided_slice %365 {offsets = [0, 0], sizes = [1, 32], strides = [1, 1]} : vector<1x128xf32> to vector<1x32xf32>
    %cst_114 = arith.constant 1.000000e+00 : f32
    %367 = vector.broadcast %cst_114 : f32 to vector<1x32xf32>
    %368 = arith.addf %366, %367 : vector<1x32xf32>
    %cst_115 = arith.constant 5.000000e-01 : f32
    %369 = vector.broadcast %cst_115 : f32 to vector<1x32xf32>
    %370 = arith.mulf %369, %368 : vector<1x32xf32>
    %371 = vector.extract_strided_slice %365 {offsets = [0, 32], sizes = [1, 32], strides = [1, 1]} : vector<1x128xf32> to vector<1x32xf32>
    %cst_116 = arith.constant 1.000000e+00 : f32
    %372 = vector.broadcast %cst_116 : f32 to vector<1x32xf32>
    %373 = arith.addf %371, %372 : vector<1x32xf32>
    %cst_117 = arith.constant 5.000000e-01 : f32
    %374 = vector.broadcast %cst_117 : f32 to vector<1x32xf32>
    %375 = arith.mulf %374, %373 : vector<1x32xf32>
    %376 = vector.extract_strided_slice %365 {offsets = [0, 64], sizes = [1, 32], strides = [1, 1]} : vector<1x128xf32> to vector<1x32xf32>
    %377 = vector.extract_strided_slice %365 {offsets = [0, 96], sizes = [1, 32], strides = [1, 1]} : vector<1x128xf32> to vector<1x32xf32>
    %cst_118 = arith.constant 1.000000e+00 : f32
    %378 = vector.broadcast %cst_118 : f32 to vector<1x32xf32>
    %379 = arith.addf %377, %378 : vector<1x32xf32>
    %cst_119 = arith.constant 5.000000e-01 : f32
    %380 = vector.broadcast %cst_119 : f32 to vector<1x32xf32>
    %381 = arith.mulf %380, %379 : vector<1x32xf32>
    %382 = arith.mulf %375, %326 : vector<1x32xf32>
    %383 = arith.mulf %370, %376 : vector<1x32xf32>
    %384 = arith.addf %382, %383 : vector<1x32xf32>
    %385 = math.tanh %384 : vector<1x32xf32>
    %386 = arith.mulf %381, %385 : vector<1x32xf32>
    %387 = arith.truncf %386 : vector<1x32xf32> to vector<1x32xbf16>
    %cst_120 = arith.constant dense<0.000000e+00> : vector<1x128xf32>
    %388 = tpu.matmul %387, %2, %cst_120 {dimension_numbers = #tpu.dot_dimension_numbers<[1], [0], [0], [1], [0, 0, 1, 1], [], []>} : vector<1x32xbf16>, vector<32x128xbf16>, vector<1x128xf32> -> vector<1x128xf32>
    %cst_121 = arith.constant dense<0.000000e+00> : vector<1x128xf32>
    %389 = tpu.matmul %360, %3, %cst_121 {dimension_numbers = #tpu.dot_dimension_numbers<[1], [0], [0], [1], [0, 0, 1, 1], [], []>} : vector<1x32xbf16>, vector<32x128xbf16>, vector<1x128xf32> -> vector<1x128xf32>
    %390 = arith.addf %388, %389 : vector<1x128xf32>
    %391 = arith.addf %390, %5 : vector<1x128xf32>
    %392 = math.tanh %391 : vector<1x128xf32>
    %393 = vector.extract_strided_slice %392 {offsets = [0, 0], sizes = [1, 32], strides = [1, 1]} : vector<1x128xf32> to vector<1x32xf32>
    %cst_122 = arith.constant 1.000000e+00 : f32
    %394 = vector.broadcast %cst_122 : f32 to vector<1x32xf32>
    %395 = arith.addf %393, %394 : vector<1x32xf32>
    %cst_123 = arith.constant 5.000000e-01 : f32
    %396 = vector.broadcast %cst_123 : f32 to vector<1x32xf32>
    %397 = arith.mulf %396, %395 : vector<1x32xf32>
    %398 = vector.extract_strided_slice %392 {offsets = [0, 32], sizes = [1, 32], strides = [1, 1]} : vector<1x128xf32> to vector<1x32xf32>
    %cst_124 = arith.constant 1.000000e+00 : f32
    %399 = vector.broadcast %cst_124 : f32 to vector<1x32xf32>
    %400 = arith.addf %398, %399 : vector<1x32xf32>
    %cst_125 = arith.constant 5.000000e-01 : f32
    %401 = vector.broadcast %cst_125 : f32 to vector<1x32xf32>
    %402 = arith.mulf %401, %400 : vector<1x32xf32>
    %403 = vector.extract_strided_slice %392 {offsets = [0, 64], sizes = [1, 32], strides = [1, 1]} : vector<1x128xf32> to vector<1x32xf32>
    %404 = vector.extract_strided_slice %392 {offsets = [0, 96], sizes = [1, 32], strides = [1, 1]} : vector<1x128xf32> to vector<1x32xf32>
    %cst_126 = arith.constant 1.000000e+00 : f32
    %405 = vector.broadcast %cst_126 : f32 to vector<1x32xf32>
    %406 = arith.addf %404, %405 : vector<1x32xf32>
    %cst_127 = arith.constant 5.000000e-01 : f32
    %407 = vector.broadcast %cst_127 : f32 to vector<1x32xf32>
    %408 = arith.mulf %407, %406 : vector<1x32xf32>
    %409 = arith.mulf %402, %353 : vector<1x32xf32>
    %410 = arith.mulf %397, %403 : vector<1x32xf32>
    %411 = arith.addf %409, %410 : vector<1x32xf32>
    %412 = math.tanh %411 : vector<1x32xf32>
    %413 = arith.mulf %408, %412 : vector<1x32xf32>
    %414 = arith.truncf %413 : vector<1x32xf32> to vector<1x32xbf16>
    %c296 = arith.constant 296 : index
    %c0_128 = arith.constant 0 : index
    %415 = vector.load %arg1[%c296, %c0_128] : memref<360x128xbf16, #tpu.memory_space<vmem>>, vector<32x128xbf16>
    %cst_129 = arith.constant dense<0.000000e+00> : vector<1x128xf32>
    %416 = tpu.matmul %414, %415, %cst_129 {dimension_numbers = #tpu.dot_dimension_numbers<[1], [0], [0], [1], [0, 0, 1, 1], [], []>} : vector<1x32xbf16>, vector<32x128xbf16>, vector<1x128xf32> -> vector<1x128xf32>
    %417 = arith.addf %359, %416 : vector<1x128xf32>
    %418 = arith.truncf %413 : vector<1x32xf32> to vector<1x32xbf16>
    %419 = vector.extract_strided_slice %9 {offsets = [7, 0], sizes = [1, 128], strides = [1, 1]} : vector<8x128xf32> to vector<1x128xf32>
    %420 = arith.truncf %386 : vector<1x32xf32> to vector<1x32xbf16>
    %cst_130 = arith.constant dense<0.000000e+00> : vector<1x128xf32>
    %421 = tpu.matmul %420, %1, %cst_130 {dimension_numbers = #tpu.dot_dimension_numbers<[1], [0], [0], [1], [0, 0, 1, 1], [], []>} : vector<1x32xbf16>, vector<32x128xbf16>, vector<1x128xf32> -> vector<1x128xf32>
    %422 = arith.addf %419, %421 : vector<1x128xf32>
    %423 = math.tanh %422 : vector<1x128xf32>
    %424 = vector.extract_strided_slice %423 {offsets = [0, 0], sizes = [1, 32], strides = [1, 1]} : vector<1x128xf32> to vector<1x32xf32>
    %cst_131 = arith.constant 1.000000e+00 : f32
    %425 = vector.broadcast %cst_131 : f32 to vector<1x32xf32>
    %426 = arith.addf %424, %425 : vector<1x32xf32>
    %cst_132 = arith.constant 5.000000e-01 : f32
    %427 = vector.broadcast %cst_132 : f32 to vector<1x32xf32>
    %428 = arith.mulf %427, %426 : vector<1x32xf32>
    %429 = vector.extract_strided_slice %423 {offsets = [0, 32], sizes = [1, 32], strides = [1, 1]} : vector<1x128xf32> to vector<1x32xf32>
    %cst_133 = arith.constant 1.000000e+00 : f32
    %430 = vector.broadcast %cst_133 : f32 to vector<1x32xf32>
    %431 = arith.addf %429, %430 : vector<1x32xf32>
    %cst_134 = arith.constant 5.000000e-01 : f32
    %432 = vector.broadcast %cst_134 : f32 to vector<1x32xf32>
    %433 = arith.mulf %432, %431 : vector<1x32xf32>
    %434 = vector.extract_strided_slice %423 {offsets = [0, 64], sizes = [1, 32], strides = [1, 1]} : vector<1x128xf32> to vector<1x32xf32>
    %435 = vector.extract_strided_slice %423 {offsets = [0, 96], sizes = [1, 32], strides = [1, 1]} : vector<1x128xf32> to vector<1x32xf32>
    %cst_135 = arith.constant 1.000000e+00 : f32
    %436 = vector.broadcast %cst_135 : f32 to vector<1x32xf32>
    %437 = arith.addf %435, %436 : vector<1x32xf32>
    %cst_136 = arith.constant 5.000000e-01 : f32
    %438 = vector.broadcast %cst_136 : f32 to vector<1x32xf32>
    %439 = arith.mulf %438, %437 : vector<1x32xf32>
    %440 = arith.mulf %433, %384 : vector<1x32xf32>
    %441 = arith.mulf %428, %434 : vector<1x32xf32>
    %442 = arith.addf %440, %441 : vector<1x32xf32>
    %443 = math.tanh %442 : vector<1x32xf32>
    %444 = arith.mulf %439, %443 : vector<1x32xf32>
    %445 = arith.truncf %444 : vector<1x32xf32> to vector<1x32xbf16>
    %cst_137 = arith.constant dense<0.000000e+00> : vector<1x128xf32>
    %446 = tpu.matmul %445, %2, %cst_137 {dimension_numbers = #tpu.dot_dimension_numbers<[1], [0], [0], [1], [0, 0, 1, 1], [], []>} : vector<1x32xbf16>, vector<32x128xbf16>, vector<1x128xf32> -> vector<1x128xf32>
    %cst_138 = arith.constant dense<0.000000e+00> : vector<1x128xf32>
    %447 = tpu.matmul %418, %3, %cst_138 {dimension_numbers = #tpu.dot_dimension_numbers<[1], [0], [0], [1], [0, 0, 1, 1], [], []>} : vector<1x32xbf16>, vector<32x128xbf16>, vector<1x128xf32> -> vector<1x128xf32>
    %448 = arith.addf %446, %447 : vector<1x128xf32>
    %449 = arith.addf %448, %5 : vector<1x128xf32>
    %450 = math.tanh %449 : vector<1x128xf32>
    %451 = vector.extract_strided_slice %450 {offsets = [0, 0], sizes = [1, 32], strides = [1, 1]} : vector<1x128xf32> to vector<1x32xf32>
    %cst_139 = arith.constant 1.000000e+00 : f32
    %452 = vector.broadcast %cst_139 : f32 to vector<1x32xf32>
    %453 = arith.addf %451, %452 : vector<1x32xf32>
    %cst_140 = arith.constant 5.000000e-01 : f32
    %454 = vector.broadcast %cst_140 : f32 to vector<1x32xf32>
    %455 = arith.mulf %454, %453 : vector<1x32xf32>
    %456 = vector.extract_strided_slice %450 {offsets = [0, 32], sizes = [1, 32], strides = [1, 1]} : vector<1x128xf32> to vector<1x32xf32>
    %cst_141 = arith.constant 1.000000e+00 : f32
    %457 = vector.broadcast %cst_141 : f32 to vector<1x32xf32>
    %458 = arith.addf %456, %457 : vector<1x32xf32>
    %cst_142 = arith.constant 5.000000e-01 : f32
    %459 = vector.broadcast %cst_142 : f32 to vector<1x32xf32>
    %460 = arith.mulf %459, %458 : vector<1x32xf32>
    %461 = vector.extract_strided_slice %450 {offsets = [0, 64], sizes = [1, 32], strides = [1, 1]} : vector<1x128xf32> to vector<1x32xf32>
    %462 = vector.extract_strided_slice %450 {offsets = [0, 96], sizes = [1, 32], strides = [1, 1]} : vector<1x128xf32> to vector<1x32xf32>
    %cst_143 = arith.constant 1.000000e+00 : f32
    %463 = vector.broadcast %cst_143 : f32 to vector<1x32xf32>
    %464 = arith.addf %462, %463 : vector<1x32xf32>
    %cst_144 = arith.constant 5.000000e-01 : f32
    %465 = vector.broadcast %cst_144 : f32 to vector<1x32xf32>
    %466 = arith.mulf %465, %464 : vector<1x32xf32>
    %467 = arith.mulf %460, %411 : vector<1x32xf32>
    %468 = arith.mulf %455, %461 : vector<1x32xf32>
    %469 = arith.addf %467, %468 : vector<1x32xf32>
    %470 = math.tanh %469 : vector<1x32xf32>
    %471 = arith.mulf %466, %470 : vector<1x32xf32>
    %472 = arith.truncf %471 : vector<1x32xf32> to vector<1x32xbf16>
    %c328 = arith.constant 328 : index
    %c0_145 = arith.constant 0 : index
    %473 = vector.load %arg1[%c328, %c0_145] : memref<360x128xbf16, #tpu.memory_space<vmem>>, vector<32x128xbf16>
    %cst_146 = arith.constant dense<0.000000e+00> : vector<1x128xf32>
    %474 = tpu.matmul %472, %473, %cst_146 {dimension_numbers = #tpu.dot_dimension_numbers<[1], [0], [0], [1], [0, 0, 1, 1], [], []>} : vector<1x32xbf16>, vector<32x128xbf16>, vector<1x128xf32> -> vector<1x128xf32>
    %475 = arith.addf %417, %474 : vector<1x128xf32>
    %cst_147 = arith.constant 0.000000e+00 : f32
    %476 = vector.broadcast %cst_147 : f32 to vector<8x128xf32>
    %c0_148 = arith.constant 0 : index
    %c0_149 = arith.constant 0 : index
    %477 = vector.load %arg3[%c0_148, %c0_149] : memref<8x128xf32, #tpu.memory_space<vmem>>, vector<8x128xf32>
    tpu.vector_store %arg3[%c0_148, %c0_149], %476 {strides = array<i32>} : memref<8x128xf32, #tpu.memory_space<vmem>>, vector<8x128xf32>,
    %c0_150 = arith.constant 0 : index
    %c0_151 = arith.constant 0 : index
    %478 = vector.load %arg3[%c0_150, %c0_151] : memref<8x128xf32, #tpu.memory_space<vmem>>, vector<1x128xf32>
    tpu.vector_store %arg3[%c0_150, %c0_151], %475 {strides = array<i32>} : memref<8x128xf32, #tpu.memory_space<vmem>>, vector<1x128xf32>,
    %c1_152 = arith.constant 1 : index
    %c0_153 = arith.constant 0 : index
    %479 = vector.load %arg3[%c1_152, %c0_153] : memref<8x128xf32, #tpu.memory_space<vmem>>, vector<1x32xf32>
    tpu.vector_store %arg3[%c1_152, %c0_153], %444 {strides = array<i32>} : memref<8x128xf32, #tpu.memory_space<vmem>>, vector<1x32xf32>,
    %c2_154 = arith.constant 2 : index
    %c0_155 = arith.constant 0 : index
    %480 = vector.load %arg3[%c2_154, %c0_155] : memref<8x128xf32, #tpu.memory_space<vmem>>, vector<1x32xf32>
    tpu.vector_store %arg3[%c2_154, %c0_155], %471 {strides = array<i32>} : memref<8x128xf32, #tpu.memory_space<vmem>>, vector<1x32xf32>,
    %c3 = arith.constant 3 : index
    %c0_156 = arith.constant 0 : index
    %481 = vector.load %arg3[%c3, %c0_156] : memref<8x128xf32, #tpu.memory_space<vmem>>, vector<1x32xf32>
    tpu.vector_store %arg3[%c3, %c0_156], %442 {strides = array<i32>} : memref<8x128xf32, #tpu.memory_space<vmem>>, vector<1x32xf32>,
    %c4 = arith.constant 4 : index
    %c0_157 = arith.constant 0 : index
    %482 = vector.load %arg3[%c4, %c0_157] : memref<8x128xf32, #tpu.memory_space<vmem>>, vector<1x32xf32>
    tpu.vector_store %arg3[%c4, %c0_157], %469 {strides = array<i32>} : memref<8x128xf32, #tpu.memory_space<vmem>>, vector<1x32xf32>,
    return
  }
}

</mosaic_0001>

<llo_original>
// kernel: lstm_forward.1
$region0: #{lstm_forward.1}
  #allocation0 [shape = 'u32[]', space=smem, size = 0x4, offset = 0x4, fixed_abs, tag = 'smem constant byte address 0x4 - core index']
  #allocation1 [shape = 'u32[144,128]{1,0:T(1,128)}', space=vmem, size = 0x12000, scoped, tag = 'internal scratch']
  %s0 = inlined_call_operand.vmem [shape: bf16[8,8], index: 0, kind: input, shape index: {}]
  %s1 = inlined_call_operand.hbm [shape: bf16[360,128], index: 1, kind: input, shape index: {}]
  %s2 = inlined_call_operand.vmem [shape: f32[3,128], index: 2, kind: input, shape index: {}]
  %s3 = inlined_call_operand.vmem [shape: f32[8,128], index: 3, kind: output, shape index: {}]
  %s4 = sld [smem:[#allocation0]]
  $region26: #{lstm_forward.1} parent=0
    _
  %s6 = ssub.s32 1, %s4
  %s7 = scalar_select 0, %s6, %s4
  $region1: #{lstm_forward.1} parent=0
    #allocation2 [shape = 'u8[92160]{0}', space=vmem, size = 0x16800, scoped, tag = 'input window, operand 1, single buffered']
    #allocation3 [shape = 's32[1]{0}', space=sflag, size = 0x4, scoped, tag = 'scoped memory for lstm_forward.1']
    %8 = vsyncpa [#allocation3], 0
    // Predicated region
    $region2: #{lstm_forward.1} parent=1 // pred_check
      _
    $region3: #{lstm_forward.1} parent=1 // pred_check_branch
      %10 = sbr.rel (0) target = $region5
    $region4: #{lstm_forward.1} parent=1 // pred_region
      _
    $region5: #{lstm_forward.1} parent=1 // pred_fallthru
      _
    // Predicated region
    $region6: #{lstm_forward.1} parent=1 // pred_check
      _
    $region7: #{lstm_forward.1} parent=1 // pred_check_branch
      %12 = sbr.rel (0) target = $region9
    $region8: #{lstm_forward.1} parent=1 // pred_region
      %s14 = ssub.s32 2880, 2880
      %15 = vsyncadd [#allocation3], %s14
      %s16 = sshll.u32 [#allocation2], 4
      %s17 = int_to_ptr.vmem [resolvable:$true] %s16
      %22 = dma.hbm_to_vmem [thread:$0]  %s1, 2880, %s17, [#allocation3], 64, 64, 4
    $region9: #{lstm_forward.1} parent=1 // pred_fallthru
      _
    // Predicated region
    $region10: #{lstm_forward.1} parent=1 // pred_check
      _
    $region11: #{lstm_forward.1} parent=1 // pred_check_branch
      %24 = sbr.rel (0) target = $region13
    $region12: #{lstm_forward.1} parent=1 // pred_region
      _
    $region13: #{lstm_forward.1} parent=1 // pred_fallthru
      _
    // Predicated region
    $region14: #{lstm_forward.1} parent=1 // pred_check
      _
    $region15: #{lstm_forward.1} parent=1 // pred_check_branch
      %26 = sbr.rel (0) target = $region17
    $region16: #{lstm_forward.1} parent=1 // pred_region
      %27 = dma.done [#allocation3], 2880
    $region17: #{lstm_forward.1} parent=1 // pred_fallthru
      _
    %v29 = vld [vmem:[#allocation2] sm:$0xf]
    %v30 = vld [vmem:[#allocation2 + $0x4] sm:$0xf]
    %v31 = vld [vmem:[#allocation2 + $0x8] sm:$0xf]
    %v32 = vld [vmem:[#allocation2 + $0xc] sm:$0xf]
    %v33 = vld [vmem:[#allocation2 + $0x10] sm:$0xf]
    %v34 = vld [vmem:[#allocation2 + $0x14] sm:$0xf]
    %v35 = vld [vmem:[#allocation2 + $0x18] sm:$0xf]
    %v36 = vld [vmem:[#allocation2 + $0x1c] sm:$0xf]
    %v37 = vld [vmem:[#allocation2 + $0x20] sm:$0xf]
    %v38 = vld [vmem:[#allocation2 + $0x24] sm:$0xf]
    %v39 = vld [vmem:[#allocation2 + $0x28] sm:$0xf]
    %v40 = vld [vmem:[#allocation2 + $0x2c] sm:$0xf]
    %v41 = vld [vmem:[#allocation2 + $0x30] sm:$0xf]
    %v42 = vld [vmem:[%s2] sm:$0x1]
    %v43 = vld [vmem:[%s2 + $0x1] sm:$0x1]
    %v44 = vld [vmem:[%s0] sm:$0xf]
    %v45 = vlaneseq
    %v46 = vshrl.u32 %v45, 7
    %v47 = vsub.s32 0, %v46
    %v48 = vrot.slane %v42, %v47
    %vm49 = vcmask 64512
    %v51 = vsel %vm49, %v44, 0
    %vm53 = vcmask 1043456
    %v55 = vsel %vm53, %v29, 0
    %57 = vmatprep.subr.bf16.mxu0 0
    %58 = vmatpush1.bf16.msra.mxu0 0
    %59 = vmatprep.subr.bf16.mxu0 0
    %60 = vmatpush1.bf16.msra.mxu0 0
    %61 = vmatprep.subr.bf16.mxu0 0
    %62 = vmatpush1.bf16.msra.mxu0 0
    %63 = vmatprep.subr.bf16.mxu0 0
    %64 = vmatpush1.bf16.msra.mxu0 0
    %65 = vmatprep.subr.bf16.mxu0 0
    %66 = vmatpush1.bf16.msra.mxu0 0
    %67 = vmatprep.subr.bf16.mxu0 0
    %68 = vmatpush1.bf16.msra.mxu0 0
    %69 = vmatprep.subr.bf16.mxu0 0
    %70 = vmatpush1.bf16.msra.mxu0 0
    %71 = vmatprep.subr.bf16.mxu0 0
    %72 = vmatpush1.bf16.msra.mxu0 %v55
    %73 = vmatprep.subr.bf16.mxu0 0
    %74 = vmatpush2.bf16.msra.mxu0 0
    %75 = vmatprep.subr.bf16.mxu0 0
    %76 = vmatpush2.bf16.msra.mxu0 0
    %77 = vmatprep.subr.bf16.mxu0 0
    %78 = vmatpush2.bf16.msra.mxu0 0
    %79 = vmatprep.subr.bf16.mxu0 0
    %80 = vmatpush2.bf16.msra.mxu0 0
    %81 = vmatprep.subr.bf16.mxu0 0
    %82 = vmatpush2.bf16.msra.mxu0 0
    %83 = vmatprep.subr.bf16.mxu0 0
    %84 = vmatpush2.bf16.msra.mxu0 0
    %85 = vmatprep.subr.bf16.mxu0 0
    %86 = vmatpush2.bf16.msra.mxu0 0
    %87 = vmatprep.subr.bf16.mxu0 0
    %88 = vmatpush2.bf16.msra.mxu0 0
    %89 = vmatprep.mubr.bf16.mxu0 0
    %90 = vmatmul.mubr.bf16.gmra.mxu0 %v51
    %v91 = vpop.f32.mrf.mxu0
    %v92 = vadd.f32 %v48, %v91
    %v93 = vpop.f32.mrf.mxu0
    %v94 = vpop.f32.mrf.mxu0
    %v95 = vpop.f32.mrf.mxu0
    %96 = vdwg.mxu0
    %v97 = vld [vmem:[%s2 + $0x2] sm:$0x1]
    %v102 = vunpack.c.l.b16 %v30
    %v103 = vunpack.c.l.b16 %v31
    %v104 = vunpack.c.l.b16 %v32
    %v105 = vunpack.c.l.b16 %v33
    %v106 = vpack.c.b16 %v103, %v102
    %v107 = vpack.c.b16 %v105, %v104
    %vm110 = vcmask 261120
    %v112 = vsel %vm110, 0, 0
    %114 = vmatprep.subr.bf16.mxu0 0
    %115 = vmatpush1.bf16.msra.mxu0 0
    %116 = vmatprep.subr.bf16.mxu0 0
    %117 = vmatpush1.bf16.msra.mxu0 0
    %118 = vmatprep.subr.bf16.mxu0 0
    %119 = vmatpush1.bf16.msra.mxu0 0
    %120 = vmatprep.subr.bf16.mxu0 0
    %121 = vmatpush1.bf16.msra.mxu0 0
    %122 = vmatprep.subr.bf16.mxu0 0
    %123 = vmatpush1.bf16.msra.mxu0 0
    %124 = vmatprep.subr.bf16.mxu0 0
    %125 = vmatpush1.bf16.msra.mxu0 0
    %126 = vmatprep.subr.bf16.mxu0 0
    %127 = vmatpush1.bf16.msra.mxu0 %v107
    %128 = vmatprep.subr.bf16.mxu0 0
    %129 = vmatpush1.bf16.msra.mxu0 %v106
    %130 = vmatprep.subr.bf16.mxu0 0
    %131 = vmatpush2.bf16.msra.mxu0 0
    %132 = vmatprep.subr.bf16.mxu0 0
    %133 = vmatpush2.bf16.msra.mxu0 0
    %134 = vmatprep.subr.bf16.mxu0 0
    %135 = vmatpush2.bf16.msra.mxu0 0
    %136 = vmatprep.subr.bf16.mxu0 0
    %137 = vmatpush2.bf16.msra.mxu0 0
    %138 = vmatprep.subr.bf16.mxu0 0
    %139 = vmatpush2.bf16.msra.mxu0 0
    %140 = vmatprep.subr.bf16.mxu0 0
    %141 = vmatpush2.bf16.msra.mxu0 0
    %142 = vmatprep.subr.bf16.mxu0 0
    %143 = vmatpush2.bf16.msra.mxu0 0
    %144 = vmatprep.subr.bf16.mxu0 0
    %145 = vmatpush2.bf16.msra.mxu0 0
    %146 = vmatprep.mubr.bf16.mxu0 0
    %147 = vmatmul.mubr.bf16.gmra.mxu0 %v112
    %v148 = vpop.f32.mrf.mxu0
    %v149 = vadd.f32 0.0, %v148
    %v150 = vpop.f32.mrf.mxu0
    %v151 = vpop.f32.mrf.mxu0
    %v152 = vpop.f32.mrf.mxu0
    %153 = vdwg.mxu0
    %v154 = vadd.f32 %v92, %v149
    %v155 = vtanh.pop %v154
    %v156 = vadd.f32 %v155, 1.0
    %v157 = vmul.f32 %v156, 0.5
    %v158 = vmul.f32 %v157, 0.0
    %160 = vrot.lane.b32.xlu0 %v155, 64
    %v161 = vpop.permute.xlu0 %160
    %v163 = vmul.f32 %v157, %v161
    %165 = vrot.lane.b32.xlu0 %v163, 32
    %v166 = vpop.permute.xlu0 %165
    %v168 = vadd.f32 %v158, %v166
    %v169 = vtanh.pop %v168
    %171 = vrot.lane.b32.xlu0 %v169, 64
    %v172 = vpop.permute.xlu0 %171
    %v174 = vmul.f32 %v157, %v172
    %v175 = vpack.c.bf16 %v174, %v174
    %v180 = vunpack.c.l.b16 %v38
    %v181 = vunpack.c.l.b16 %v39
    %v182 = vunpack.c.l.b16 %v40
    %v183 = vunpack.c.l.b16 %v41
    %v184 = vpack.c.b16 %v181, %v180
    %v185 = vpack.c.b16 %v183, %v182
    %188 = vmatprep.subr.bf16.mxu0 0
    %189 = vmatpush1.bf16.msra.mxu0 0
    %190 = vmatprep.subr.bf16.mxu0 0
    %191 = vmatpush1.bf16.msra.mxu0 0
    %192 = vmatprep.subr.bf16.mxu0 0
    %193 = vmatpush1.bf16.msra.mxu0 0
    %194 = vmatprep.subr.bf16.mxu0 0
    %195 = vmatpush1.bf16.msra.mxu0 0
    %196 = vmatprep.subr.bf16.mxu0 0
    %197 = vmatpush1.bf16.msra.mxu0 0
    %198 = vmatprep.subr.bf16.mxu0 0
    %199 = vmatpush1.bf16.msra.mxu0 0
    %200 = vmatprep.subr.bf16.mxu0 0
    %201 = vmatpush1.bf16.msra.mxu0 %v185
    %202 = vmatprep.subr.bf16.mxu0 0
    %203 = vmatpush1.bf16.msra.mxu0 %v184
    %204 = vmatprep.subr.bf16.mxu0 0
    %205 = vmatpush2.bf16.msra.mxu0 0
    %206 = vmatprep.subr.bf16.mxu0 0
    %207 = vmatpush2.bf16.msra.mxu0 0
    %208 = vmatprep.subr.bf16.mxu0 0
    %209 = vmatpush2.bf16.msra.mxu0 0
    %210 = vmatprep.subr.bf16.mxu0 0
    %211 = vmatpush2.bf16.msra.mxu0 0
    %212 = vmatprep.subr.bf16.mxu0 0
    %213 = vmatpush2.bf16.msra.mxu0 0
    %214 = vmatprep.subr.bf16.mxu0 0
    %215 = vmatpush2.bf16.msra.mxu0 0
    %216 = vmatprep.subr.bf16.mxu0 0
    %217 = vmatpush2.bf16.msra.mxu0 0
    %218 = vmatprep.subr.bf16.mxu0 0
    %219 = vmatpush2.bf16.msra.mxu0 0
    %220 = vmatprep.mubr.bf16.mxu0 0
    %221 = vmatmul.mubr.bf16.gmra.mxu0 %v112
    %v222 = vpop.f32.mrf.mxu0
    %v223 = vadd.f32 0.0, %v222
    %v224 = vpop.f32.mrf.mxu0
    %v225 = vpop.f32.mrf.mxu0
    %v226 = vpop.f32.mrf.mxu0
    %227 = vdwg.mxu0
    %229 = vrot.lane.b32.xlu0 %v175, 32
    %v230 = vpop.permute.xlu0 %229
    %v235 = vunpack.c.l.b16 %v34
    %v236 = vunpack.c.l.b16 %v35
    %v237 = vunpack.c.l.b16 %v36
    %v238 = vunpack.c.l.b16 %v37
    %v239 = vpack.c.b16 %v236, %v235
    %v240 = vpack.c.b16 %v238, %v237
    %v244 = vsel %vm110, %v230, 0
    %246 = vmatprep.subr.bf16.mxu0 0
    %247 = vmatpush1.bf16.msra.mxu0 0
    %248 = vmatprep.subr.bf16.mxu0 0
    %249 = vmatpush1.bf16.msra.mxu0 0
    %250 = vmatprep.subr.bf16.mxu0 0
    %251 = vmatpush1.bf16.msra.mxu0 0
    %252 = vmatprep.subr.bf16.mxu0 0
    %253 = vmatpush1.bf16.msra.mxu0 0
    %254 = vmatprep.subr.bf16.mxu0 0
    %255 = vmatpush1.bf16.msra.mxu0 0
    %256 = vmatprep.subr.bf16.mxu0 0
    %257 = vmatpush1.bf16.msra.mxu0 0
    %258 = vmatprep.subr.bf16.mxu0 0
    %259 = vmatpush1.bf16.msra.mxu0 %v240
    %260 = vmatprep.subr.bf16.mxu0 0
    %261 = vmatpush1.bf16.msra.mxu0 %v239
    %262 = vmatprep.subr.bf16.mxu0 0
    %263 = vmatpush2.bf16.msra.mxu0 0
    %264 = vmatprep.subr.bf16.mxu0 0
    %265 = vmatpush2.bf16.msra.mxu0 0
    %266 = vmatprep.subr.bf16.mxu0 0
    %267 = vmatpush2.bf16.msra.mxu0 0
    %268 = vmatprep.subr.bf16.mxu0 0
    %269 = vmatpush2.bf16.msra.mxu0 0
    %270 = vmatprep.subr.bf16.mxu0 0
    %271 = vmatpush2.bf16.msra.mxu0 0
    %272 = vmatprep.subr.bf16.mxu0 0
    %273 = vmatpush2.bf16.msra.mxu0 0
    %274 = vmatprep.subr.bf16.mxu0 0
    %275 = vmatpush2.bf16.msra.mxu0 0
    %276 = vmatprep.subr.bf16.mxu0 0
    %277 = vmatpush2.bf16.msra.mxu0 0
    %278 = vmatprep.mubr.bf16.mxu0 0
    %279 = vmatmul.mubr.bf16.gmra.mxu0 %v244
    %v280 = vpop.f32.mrf.mxu0
    %v281 = vadd.f32 %v223, %v280
    %v282 = vpop.f32.mrf.mxu0
    %v283 = vpop.f32.mrf.mxu0
    %v284 = vpop.f32.mrf.mxu0
    %285 = vdwg.mxu0
    %v286 = vadd.f32 %v281, %v43
    %v287 = vtanh.pop %v286
    %v288 = vadd.f32 %v287, 1.0
    %v289 = vmul.f32 %v288, 0.5
    %v290 = vmul.f32 %v289, 0.0
    %292 = vrot.lane.b32.xlu0 %v287, 64
    %v293 = vpop.permute.xlu0 %292
    %v295 = vmul.f32 %v289, %v293
    %297 = vrot.lane.b32.xlu0 %v295, 32
    %v298 = vpop.permute.xlu0 %297
    %v300 = vadd.f32 %v290, %v298
    %v301 = vtanh.pop %v300
    %303 = vrot.lane.b32.xlu0 %v301, 64
    %v304 = vpop.permute.xlu0 %303
    %v306 = vmul.f32 %v289, %v304
    %v307 = vpack.c.bf16 %v306, %v306
    %v308 = vld [vmem:[#allocation2 + $0x34] sm:$0xf]
    %v309 = vld [vmem:[#allocation2 + $0x38] sm:$0xf]
    %v310 = vld [vmem:[#allocation2 + $0x3c] sm:$0xf]
    %v311 = vld [vmem:[#allocation2 + $0x40] sm:$0xf]
    %313 = vrot.lane.b32.xlu0 %v307, 32
    %v314 = vpop.permute.xlu0 %313
    %v319 = vunpack.c.l.b16 %v308
    %v320 = vunpack.c.l.b16 %v309
    %v321 = vunpack.c.l.b16 %v310
    %v322 = vunpack.c.l.b16 %v311
    %v323 = vpack.c.b16 %v320, %v319
    %v324 = vpack.c.b16 %v322, %v321
    %v328 = vsel %vm110, %v314, 0
    %330 = vmatprep.subr.bf16.mxu0 0
    %331 = vmatpush1.bf16.msra.mxu0 0
    %332 = vmatprep.subr.bf16.mxu0 0
    %333 = vmatpush1.bf16.msra.mxu0 0
    %334 = vmatprep.subr.bf16.mxu0 0
    %335 = vmatpush1.bf16.msra.mxu0 0
    %336 = vmatprep.subr.bf16.mxu0 0
    %337 = vmatpush1.bf16.msra.mxu0 0
    %338 = vmatprep.subr.bf16.mxu0 0
    %339 = vmatpush1.bf16.msra.mxu0 0
    %340 = vmatprep.subr.bf16.mxu0 0
    %341 = vmatpush1.bf16.msra.mxu0 0
    %342 = vmatprep.subr.bf16.mxu0 0
    %343 = vmatpush1.bf16.msra.mxu0 %v324
    %344 = vmatprep.subr.bf16.mxu0 0
    %345 = vmatpush1.bf16.msra.mxu0 %v323
    %346 = vmatprep.subr.bf16.mxu0 0
    %347 = vmatpush2.bf16.msra.mxu0 0
    %348 = vmatprep.subr.bf16.mxu0 0
    %349 = vmatpush2.bf16.msra.mxu0 0
    %350 = vmatprep.subr.bf16.mxu0 0
    %351 = vmatpush2.bf16.msra.mxu0 0
    %352 = vmatprep.subr.bf16.mxu0 0
    %353 = vmatpush2.bf16.msra.mxu0 0
    %354 = vmatprep.subr.bf16.mxu0 0
    %355 = vmatpush2.bf16.msra.mxu0 0
    %356 = vmatprep.subr.bf16.mxu0 0
    %357 = vmatpush2.bf16.msra.mxu0 0
    %358 = vmatprep.subr.bf16.mxu0 0
    %359 = vmatpush2.bf16.msra.mxu0 0
    %360 = vmatprep.subr.bf16.mxu0 0
    %361 = vmatpush2.bf16.msra.mxu0 0
    %362 = vmatprep.mubr.bf16.mxu0 0
    %363 = vmatmul.mubr.bf16.gmra.mxu0 %v328
    %v364 = vpop.f32.mrf.mxu0
    %v365 = vadd.f32 0.0, %v364
    %v366 = vpop.f32.mrf.mxu0
    %v367 = vpop.f32.mrf.mxu0
    %v368 = vpop.f32.mrf.mxu0
    %369 = vdwg.mxu0
    %v370 = vadd.f32 %v97, %v365
    %371 = vmatprep.subr.bf16.mxu0 0
    %372 = vmatpush1.bf16.msra.mxu0 0
    %373 = vmatprep.subr.bf16.mxu0 0
    %374 = vmatpush1.bf16.msra.mxu0 0
    %375 = vmatprep.subr.bf16.mxu0 0
    %376 = vmatpush1.bf16.msra.mxu0 0
    %377 = vmatprep.subr.bf16.mxu0 0
    %378 = vmatpush1.bf16.msra.mxu0 0
    %379 = vmatprep.subr.bf16.mxu0 0
    %380 = vmatpush1.bf16.msra.mxu0 0
    %381 = vmatprep.subr.bf16.mxu0 0
    %382 = vmatpush1.bf16.msra.mxu0 0
    %383 = vmatprep.subr.bf16.mxu0 0
    %384 = vmatpush1.bf16.msra.mxu0 %v107
    %385 = vmatprep.subr.bf16.mxu0 0
    %386 = vmatpush1.bf16.msra.mxu0 %v106
    %387 = vmatprep.subr.bf16.mxu0 0
    %388 = vmatpush2.bf16.msra.mxu0 0
    %389 = vmatprep.subr.bf16.mxu0 0
    %390 = vmatpush2.bf16.msra.mxu0 0
    %391 = vmatprep.subr.bf16.mxu0 0
    %392 = vmatpush2.bf16.msra.mxu0 0
    %393 = vmatprep.subr.bf16.mxu0 0
    %394 = vmatpush2.bf16.msra.mxu0 0
    %395 = vmatprep.subr.bf16.mxu0 0
    %396 = vmatpush2.bf16.msra.mxu0 0
    %397 = vmatprep.subr.bf16.mxu0 0
    %398 = vmatpush2.bf16.msra.mxu0 0
    %399 = vmatprep.subr.bf16.mxu0 0
    %400 = vmatpush2.bf16.msra.mxu0 0
    %401 = vmatprep.subr.bf16.mxu0 0
    %402 = vmatpush2.bf16.msra.mxu0 0
    %403 = vmatprep.mubr.bf16.mxu0 0
    %404 = vmatmul.mubr.bf16.gmra.mxu0 %v244
    %v405 = vpop.f32.mrf.mxu0
    %v406 = vadd.f32 0.0, %v405
    %v407 = vpop.f32.mrf.mxu0
    %v408 = vpop.f32.mrf.mxu0
    %v409 = vpop.f32.mrf.mxu0
    %410 = vdwg.mxu0
    %v412 = vrot.slane %v406, 7
    %v414 = vadd.f32 %v92, %v412
    %v415 = vtanh.pop %v414
    %v416 = vadd.f32 %v415, 1.0
    %v417 = vmul.f32 %v416, 0.5
    %v419 = vrot.slane %v168, 7
    %v421 = vmul.f32 %v417, %v419
    %423 = vrot.lane.b32.xlu0 %v415, 64
    %v424 = vpop.permute.xlu0 %423
    %v426 = vmul.f32 %v417, %v424
    %428 = vrot.lane.b32.xlu0 %v426, 32
    %v429 = vpop.permute.xlu0 %428
    %v431 = vadd.f32 %v421, %v429
    %v432 = vtanh.pop %v431
    %434 = vrot.lane.b32.xlu0 %v432, 64
    %v435 = vpop.permute.xlu0 %434
    %v437 = vmul.f32 %v417, %v435
    %v438 = vpack.c.bf16 %v437, %v437
    %439 = vmatprep.subr.bf16.mxu0 0
    %440 = vmatpush1.bf16.msra.mxu0 0
    %441 = vmatprep.subr.bf16.mxu0 0
    %442 = vmatpush1.bf16.msra.mxu0 0
    %443 = vmatprep.subr.bf16.mxu0 0
    %444 = vmatpush1.bf16.msra.mxu0 0
    %445 = vmatprep.subr.bf16.mxu0 0
    %446 = vmatpush1.bf16.msra.mxu0 0
    %447 = vmatprep.subr.bf16.mxu0 0
    %448 = vmatpush1.bf16.msra.mxu0 0
    %449 = vmatprep.subr.bf16.mxu0 0
    %450 = vmatpush1.bf16.msra.mxu0 0
    %451 = vmatprep.subr.bf16.mxu0 0
    %452 = vmatpush1.bf16.msra.mxu0 %v185
    %453 = vmatprep.subr.bf16.mxu0 0
    %454 = vmatpush1.bf16.msra.mxu0 %v184
    %455 = vmatprep.subr.bf16.mxu0 0
    %456 = vmatpush2.bf16.msra.mxu0 0
    %457 = vmatprep.subr.bf16.mxu0 0
    %458 = vmatpush2.bf16.msra.mxu0 0
    %459 = vmatprep.subr.bf16.mxu0 0
    %460 = vmatpush2.bf16.msra.mxu0 0
    %461 = vmatprep.subr.bf16.mxu0 0
    %462 = vmatpush2.bf16.msra.mxu0 0
    %463 = vmatprep.subr.bf16.mxu0 0
    %464 = vmatpush2.bf16.msra.mxu0 0
    %465 = vmatprep.subr.bf16.mxu0 0
    %466 = vmatpush2.bf16.msra.mxu0 0
    %467 = vmatprep.subr.bf16.mxu0 0
    %468 = vmatpush2.bf16.msra.mxu0 0
    %469 = vmatprep.subr.bf16.mxu0 0
    %470 = vmatpush2.bf16.msra.mxu0 0
    %471 = vmatprep.mubr.bf16.mxu0 0
    %472 = vmatmul.mubr.bf16.gmra.mxu0 %v328
    %v473 = vpop.f32.mrf.mxu0
    %v474 = vadd.f32 0.0, %v473
    %v475 = vpop.f32.mrf.mxu0
    %v476 = vpop.f32.mrf.mxu0
    %v477 = vpop.f32.mrf.mxu0
    %478 = vdwg.mxu0
    %v480 = vshrl.u32 %v438, 16
    %482 = vrot.lane.b32.xlu0 %v480, 32
    %v483 = vpop.permute.xlu0 %482
    %v485 = vsel %vm110, %v483, 0
    %487 = vmatprep.subr.bf16.mxu0 0
    %488 = vmatpush1.bf16.msra.mxu0 0
    %489 = vmatprep.subr.bf16.mxu0 0
    %490 = vmatpush1.bf16.msra.mxu0 0
    %491 = vmatprep.subr.bf16.mxu0 0
    %492 = vmatpush1.bf16.msra.mxu0 0
    %493 = vmatprep.subr.bf16.mxu0 0
    %494 = vmatpush1.bf16.msra.mxu0 0
    %495 = vmatprep.subr.bf16.mxu0 0
    %496 = vmatpush1.bf16.msra.mxu0 0
    %497 = vmatprep.subr.bf16.mxu0 0
    %498 = vmatpush1.bf16.msra.mxu0 0
    %499 = vmatprep.subr.bf16.mxu0 0
    %500 = vmatpush1.bf16.msra.mxu0 %v240
    %501 = vmatprep.subr.bf16.mxu0 0
    %502 = vmatpush1.bf16.msra.mxu0 %v239
    %503 = vmatprep.subr.bf16.mxu0 0
    %504 = vmatpush2.bf16.msra.mxu0 0
    %505 = vmatprep.subr.bf16.mxu0 0
    %506 = vmatpush2.bf16.msra.mxu0 0
    %507 = vmatprep.subr.bf16.mxu0 0
    %508 = vmatpush2.bf16.msra.mxu0 0
    %509 = vmatprep.subr.bf16.mxu0 0
    %510 = vmatpush2.bf16.msra.mxu0 0
    %511 = vmatprep.subr.bf16.mxu0 0
    %512 = vmatpush2.bf16.msra.mxu0 0
    %513 = vmatprep.subr.bf16.mxu0 0
    %514 = vmatpush2.bf16.msra.mxu0 0
    %515 = vmatprep.subr.bf16.mxu0 0
    %516 = vmatpush2.bf16.msra.mxu0 0
    %517 = vmatprep.subr.bf16.mxu0 0
    %518 = vmatpush2.bf16.msra.mxu0 0
    %519 = vmatprep.mubr.bf16.mxu0 0
    %520 = vmatmul.mubr.bf16.gmra.mxu0 %v485
    %v521 = vpop.f32.mrf.mxu0
    %v522 = vadd.f32 %v474, %v521
    %v523 = vpop.f32.mrf.mxu0
    %v524 = vpop.f32.mrf.mxu0
    %v525 = vpop.f32.mrf.mxu0
    %526 = vdwg.mxu0
    %v527 = vadd.f32 %v522, %v43
    %v528 = vtanh.pop %v527
    %v529 = vadd.f32 %v528, 1.0
    %v530 = vmul.f32 %v529, 0.5
    %v531 = vmul.f32 %v530, %v300
    %533 = vrot.lane.b32.xlu0 %v528, 64
    %v534 = vpop.permute.xlu0 %533
    %v536 = vmul.f32 %v530, %v534
    %538 = vrot.lane.b32.xlu0 %v536, 32
    %v539 = vpop.permute.xlu0 %538
    %v541 = vadd.f32 %v531, %v539
    %v542 = vtanh.pop %v541
    %544 = vrot.lane.b32.xlu0 %v542, 64
    %v545 = vpop.permute.xlu0 %544
    %v547 = vmul.f32 %v530, %v545
    %v548 = vpack.c.bf16 %v547, %v547
    %v549 = vld [vmem:[#allocation2 + $0x44] sm:$0xf]
    %v550 = vld [vmem:[#allocation2 + $0x48] sm:$0xf]
    %v551 = vld [vmem:[#allocation2 + $0x4c] sm:$0xf]
    %v552 = vld [vmem:[#allocation2 + $0x50] sm:$0xf]
    %554 = vrot.lane.b32.xlu0 %v548, 32
    %v555 = vpop.permute.xlu0 %554
    %v560 = vunpack.c.l.b16 %v549
    %v561 = vunpack.c.l.b16 %v550
    %v562 = vunpack.c.l.b16 %v551
    %v563 = vunpack.c.l.b16 %v552
    %v564 = vpack.c.b16 %v561, %v560
    %v565 = vpack.c.b16 %v563, %v562
    %v569 = vsel %vm110, %v555, 0
    %571 = vmatprep.subr.bf16.mxu0 0
    %572 = vmatpush1.bf16.msra.mxu0 0
    %573 = vmatprep.subr.bf16.mxu0 0
    %574 = vmatpush1.bf16.msra.mxu0 0
    %575 = vmatprep.subr.bf16.mxu0 0
    %576 = vmatpush1.bf16.msra.mxu0 0
    %577 = vmatprep.subr.bf16.mxu0 0
    %578 = vmatpush1.bf16.msra.mxu0 0
    %579 = vmatprep.subr.bf16.mxu0 0
    %580 = vmatpush1.bf16.msra.mxu0 0
    %581 = vmatprep.subr.bf16.mxu0 0
    %582 = vmatpush1.bf16.msra.mxu0 0
    %583 = vmatprep.subr.bf16.mxu0 0
    %584 = vmatpush1.bf16.msra.mxu0 %v565
    %585 = vmatprep.subr.bf16.mxu0 0
    %586 = vmatpush1.bf16.msra.mxu0 %v564
    %587 = vmatprep.subr.bf16.mxu0 0
    %588 = vmatpush2.bf16.msra.mxu0 0
    %589 = vmatprep.subr.bf16.mxu0 0
    %590 = vmatpush2.bf16.msra.mxu0 0
    %591 = vmatprep.subr.bf16.mxu0 0
    %592 = vmatpush2.bf16.msra.mxu0 0
    %593 = vmatprep.subr.bf16.mxu0 0
    %594 = vmatpush2.bf16.msra.mxu0 0
    %595 = vmatprep.subr.bf16.mxu0 0
    %596 = vmatpush2.bf16.msra.mxu0 0
    %597 = vmatprep.subr.bf16.mxu0 0
    %598 = vmatpush2.bf16.msra.mxu0 0
    %599 = vmatprep.subr.bf16.mxu0 0
    %600 = vmatpush2.bf16.msra.mxu0 0
    %601 = vmatprep.subr.bf16.mxu0 0
    %602 = vmatpush2.bf16.msra.mxu0 0
    %603 = vmatprep.mubr.bf16.mxu0 0
    %604 = vmatmul.mubr.bf16.gmra.mxu0 %v569
    %v605 = vpop.f32.mrf.mxu0
    %v606 = vadd.f32 0.0, %v605
    %v607 = vpop.f32.mrf.mxu0
    %v608 = vpop.f32.mrf.mxu0
    %v609 = vpop.f32.mrf.mxu0
    %610 = vdwg.mxu0
    %v611 = vadd.f32 %v370, %v606
    %612 = vmatprep.subr.bf16.mxu0 0
    %613 = vmatpush1.bf16.msra.mxu0 0
    %614 = vmatprep.subr.bf16.mxu0 0
    %615 = vmatpush1.bf16.msra.mxu0 0
    %616 = vmatprep.subr.bf16.mxu0 0
    %617 = vmatpush1.bf16.msra.mxu0 0
    %618 = vmatprep.subr.bf16.mxu0 0
    %619 = vmatpush1.bf16.msra.mxu0 0
    %620 = vmatprep.subr.bf16.mxu0 0
    %621 = vmatpush1.bf16.msra.mxu0 0
    %622 = vmatprep.subr.bf16.mxu0 0
    %623 = vmatpush1.bf16.msra.mxu0 0
    %624 = vmatprep.subr.bf16.mxu0 0
    %625 = vmatpush1.bf16.msra.mxu0 %v107
    %626 = vmatprep.subr.bf16.mxu0 0
    %627 = vmatpush1.bf16.msra.mxu0 %v106
    %628 = vmatprep.subr.bf16.mxu0 0
    %629 = vmatpush2.bf16.msra.mxu0 0
    %630 = vmatprep.subr.bf16.mxu0 0
    %631 = vmatpush2.bf16.msra.mxu0 0
    %632 = vmatprep.subr.bf16.mxu0 0
    %633 = vmatpush2.bf16.msra.mxu0 0
    %634 = vmatprep.subr.bf16.mxu0 0
    %635 = vmatpush2.bf16.msra.mxu0 0
    %636 = vmatprep.subr.bf16.mxu0 0
    %637 = vmatpush2.bf16.msra.mxu0 0
    %638 = vmatprep.subr.bf16.mxu0 0
    %639 = vmatpush2.bf16.msra.mxu0 0
    %640 = vmatprep.subr.bf16.mxu0 0
    %641 = vmatpush2.bf16.msra.mxu0 0
    %642 = vmatprep.subr.bf16.mxu0 0
    %643 = vmatpush2.bf16.msra.mxu0 0
    %644 = vmatprep.mubr.bf16.mxu0 0
    %645 = vmatmul.mubr.bf16.gmra.mxu0 %v485
    %v646 = vpop.f32.mrf.mxu0
    %v647 = vadd.f32 0.0, %v646
    %v648 = vpop.f32.mrf.mxu0
    %v649 = vpop.f32.mrf.mxu0
    %v650 = vpop.f32.mrf.mxu0
    %651 = vdwg.mxu0
    %v653 = vrot.slane %v647, 6
    %v655 = vadd.f32 %v92, %v653
    %v656 = vtanh.pop %v655
    %v657 = vadd.f32 %v656, 1.0
    %v658 = vmul.f32 %v657, 0.5
    %v660 = vrot.slane %v431, 7
    %v662 = vmul.f32 %v658, %v660
    %664 = vrot.lane.b32.xlu0 %v656, 64
    %v665 = vpop.permute.xlu0 %664
    %v667 = vmul.f32 %v658, %v665
    %669 = vrot.lane.b32.xlu0 %v667, 32
    %v670 = vpop.permute.xlu0 %669
    %v672 = vadd.f32 %v662, %v670
    %v673 = vtanh.pop %v672
    %675 = vrot.lane.b32.xlu0 %v673, 64
    %v676 = vpop.permute.xlu0 %675
    %v678 = vmul.f32 %v658, %v676
    %v679 = vpack.c.bf16 %v678, %v678
    %680 = vmatprep.subr.bf16.mxu0 0
    %681 = vmatpush1.bf16.msra.mxu0 0
    %682 = vmatprep.subr.bf16.mxu0 0
    %683 = vmatpush1.bf16.msra.mxu0 0
    %684 = vmatprep.subr.bf16.mxu0 0
    %685 = vmatpush1.bf16.msra.mxu0 0
    %686 = vmatprep.subr.bf16.mxu0 0
    %687 = vmatpush1.bf16.msra.mxu0 0
    %688 = vmatprep.subr.bf16.mxu0 0
    %689 = vmatpush1.bf16.msra.mxu0 0
    %690 = vmatprep.subr.bf16.mxu0 0
    %691 = vmatpush1.bf16.msra.mxu0 0
    %692 = vmatprep.subr.bf16.mxu0 0
    %693 = vmatpush1.bf16.msra.mxu0 %v185
    %694 = vmatprep.subr.bf16.mxu0 0
    %695 = vmatpush1.bf16.msra.mxu0 %v184
    %696 = vmatprep.subr.bf16.mxu0 0
    %697 = vmatpush2.bf16.msra.mxu0 0
    %698 = vmatprep.subr.bf16.mxu0 0
    %699 = vmatpush2.bf16.msra.mxu0 0
    %700 = vmatprep.subr.bf16.mxu0 0
    %701 = vmatpush2.bf16.msra.mxu0 0
    %702 = vmatprep.subr.bf16.mxu0 0
    %703 = vmatpush2.bf16.msra.mxu0 0
    %704 = vmatprep.subr.bf16.mxu0 0
    %705 = vmatpush2.bf16.msra.mxu0 0
    %706 = vmatprep.subr.bf16.mxu0 0
    %707 = vmatpush2.bf16.msra.mxu0 0
    %708 = vmatprep.subr.bf16.mxu0 0
    %709 = vmatpush2.bf16.msra.mxu0 0
    %710 = vmatprep.subr.bf16.mxu0 0
    %711 = vmatpush2.bf16.msra.mxu0 0
    %712 = vmatprep.mubr.bf16.mxu0 0
    %713 = vmatmul.mubr.bf16.gmra.mxu0 %v569
    %v714 = vpop.f32.mrf.mxu0
    %v715 = vadd.f32 0.0, %v714
    %v716 = vpop.f32.mrf.mxu0
    %v717 = vpop.f32.mrf.mxu0
    %v718 = vpop.f32.mrf.mxu0
    %719 = vdwg.mxu0
    %v721 = vrot.slane %v679, 1
    %722 = vrot.lane.b32.xlu0 %v721, 32
    %v723 = vpop.permute.xlu0 %722
    %v725 = vsel %vm110, %v723, 0
    %727 = vmatprep.subr.bf16.mxu0 0
    %728 = vmatpush1.bf16.msra.mxu0 0
    %729 = vmatprep.subr.bf16.mxu0 0
    %730 = vmatpush1.bf16.msra.mxu0 0
    %731 = vmatprep.subr.bf16.mxu0 0
    %732 = vmatpush1.bf16.msra.mxu0 0
    %733 = vmatprep.subr.bf16.mxu0 0
    %734 = vmatpush1.bf16.msra.mxu0 0
    %735 = vmatprep.subr.bf16.mxu0 0
    %736 = vmatpush1.bf16.msra.mxu0 0
    %737 = vmatprep.subr.bf16.mxu0 0
    %738 = vmatpush1.bf16.msra.mxu0 0
    %739 = vmatprep.subr.bf16.mxu0 0
    %740 = vmatpush1.bf16.msra.mxu0 %v240
    %741 = vmatprep.subr.bf16.mxu0 0
    %742 = vmatpush1.bf16.msra.mxu0 %v239
    %743 = vmatprep.subr.bf16.mxu0 0
    %744 = vmatpush2.bf16.msra.mxu0 0
    %745 = vmatprep.subr.bf16.mxu0 0
    %746 = vmatpush2.bf16.msra.mxu0 0
    %747 = vmatprep.subr.bf16.mxu0 0
    %748 = vmatpush2.bf16.msra.mxu0 0
    %749 = vmatprep.subr.bf16.mxu0 0
    %750 = vmatpush2.bf16.msra.mxu0 0
    %751 = vmatprep.subr.bf16.mxu0 0
    %752 = vmatpush2.bf16.msra.mxu0 0
    %753 = vmatprep.subr.bf16.mxu0 0
    %754 = vmatpush2.bf16.msra.mxu0 0
    %755 = vmatprep.subr.bf16.mxu0 0
    %756 = vmatpush2.bf16.msra.mxu0 0
    %757 = vmatprep.subr.bf16.mxu0 0
    %758 = vmatpush2.bf16.msra.mxu0 0
    %759 = vmatprep.mubr.bf16.mxu0 0
    %760 = vmatmul.mubr.bf16.gmra.mxu0 %v725
    %v761 = vpop.f32.mrf.mxu0
    %v762 = vadd.f32 %v715, %v761
    %v763 = vpop.f32.mrf.mxu0
    %v764 = vpop.f32.mrf.mxu0
    %v765 = vpop.f32.mrf.mxu0
    %766 = vdwg.mxu0
    %v767 = vadd.f32 %v762, %v43
    %v768 = vtanh.pop %v767
    %v769 = vadd.f32 %v768, 1.0
    %v770 = vmul.f32 %v769, 0.5
    %v771 = vmul.f32 %v770, %v541
    %773 = vrot.lane.b32.xlu0 %v768, 64
    %v774 = vpop.permute.xlu0 %773
    %v776 = vmul.f32 %v770, %v774
    %778 = vrot.lane.b32.xlu0 %v776, 32
    %v779 = vpop.permute.xlu0 %778
    %v781 = vadd.f32 %v771, %v779
    %v782 = vtanh.pop %v781
    %784 = vrot.lane.b32.xlu0 %v782, 64
    %v785 = vpop.permute.xlu0 %784
    %v787 = vmul.f32 %v770, %v785
    %v788 = vpack.c.bf16 %v787, %v787
    %v789 = vld [vmem:[#allocation2 + $0x54] sm:$0xf]
    %v790 = vld [vmem:[#allocation2 + $0x58] sm:$0xf]
    %v791 = vld [vmem:[#allocation2 + $0x5c] sm:$0xf]
    %v792 = vld [vmem:[#allocation2 + $0x60] sm:$0xf]
    %794 = vrot.lane.b32.xlu0 %v788, 32
    %v795 = vpop.permute.xlu0 %794
    %v800 = vunpack.c.l.b16 %v789
    %v801 = vunpack.c.l.b16 %v790
    %v802 = vunpack.c.l.b16 %v791
    %v803 = vunpack.c.l.b16 %v792
    %v804 = vpack.c.b16 %v801, %v800
    %v805 = vpack.c.b16 %v803, %v802
    %v809 = vsel %vm110, %v795, 0
    %811 = vmatprep.subr.bf16.mxu0 0
    %812 = vmatpush1.bf16.msra.mxu0 0
    %813 = vmatprep.subr.bf16.mxu0 0
    %814 = vmatpush1.bf16.msra.mxu0 0
    %815 = vmatprep.subr.bf16.mxu0 0
    %816 = vmatpush1.bf16.msra.mxu0 0
    %817 = vmatprep.subr.bf16.mxu0 0
    %818 = vmatpush1.bf16.msra.mxu0 0
    %819 = vmatprep.subr.bf16.mxu0 0
    %820 = vmatpush1.bf16.msra.mxu0 0
    %821 = vmatprep.subr.bf16.mxu0 0
    %822 = vmatpush1.bf16.msra.mxu0 0
    %823 = vmatprep.subr.bf16.mxu0 0
    %824 = vmatpush1.bf16.msra.mxu0 %v805
    %825 = vmatprep.subr.bf16.mxu0 0
    %826 = vmatpush1.bf16.msra.mxu0 %v804
    %827 = vmatprep.subr.bf16.mxu0 0
    %828 = vmatpush2.bf16.msra.mxu0 0
    %829 = vmatprep.subr.bf16.mxu0 0
    %830 = vmatpush2.bf16.msra.mxu0 0
    %831 = vmatprep.subr.bf16.mxu0 0
    %832 = vmatpush2.bf16.msra.mxu0 0
    %833 = vmatprep.subr.bf16.mxu0 0
    %834 = vmatpush2.bf16.msra.mxu0 0
    %835 = vmatprep.subr.bf16.mxu0 0
    %836 = vmatpush2.bf16.msra.mxu0 0
    %837 = vmatprep.subr.bf16.mxu0 0
    %838 = vmatpush2.bf16.msra.mxu0 0
    %839 = vmatprep.subr.bf16.mxu0 0
    %840 = vmatpush2.bf16.msra.mxu0 0
    %841 = vmatprep.subr.bf16.mxu0 0
    %842 = vmatpush2.bf16.msra.mxu0 0
    %843 = vmatprep.mubr.bf16.mxu0 0
    %844 = vmatmul.mubr.bf16.gmra.mxu0 %v809
    %v845 = vpop.f32.mrf.mxu0
    %v846 = vadd.f32 0.0, %v845
    %v847 = vpop.f32.mrf.mxu0
    %v848 = vpop.f32.mrf.mxu0
    %v849 = vpop.f32.mrf.mxu0
    %850 = vdwg.mxu0
    %v851 = vadd.f32 %v611, %v846
    %852 = vmatprep.subr.bf16.mxu0 0
    %853 = vmatpush1.bf16.msra.mxu0 0
    %854 = vmatprep.subr.bf16.mxu0 0
    %855 = vmatpush1.bf16.msra.mxu0 0
    %856 = vmatprep.subr.bf16.mxu0 0
    %857 = vmatpush1.bf16.msra.mxu0 0
    %858 = vmatprep.subr.bf16.mxu0 0
    %859 = vmatpush1.bf16.msra.mxu0 0
    %860 = vmatprep.subr.bf16.mxu0 0
    %861 = vmatpush1.bf16.msra.mxu0 0
    %862 = vmatprep.subr.bf16.mxu0 0
    %863 = vmatpush1.bf16.msra.mxu0 0
    %864 = vmatprep.subr.bf16.mxu0 0
    %865 = vmatpush1.bf16.msra.mxu0 %v107
    %866 = vmatprep.subr.bf16.mxu0 0
    %867 = vmatpush1.bf16.msra.mxu0 %v106
    %868 = vmatprep.subr.bf16.mxu0 0
    %869 = vmatpush2.bf16.msra.mxu0 0
    %870 = vmatprep.subr.bf16.mxu0 0
    %871 = vmatpush2.bf16.msra.mxu0 0
    %872 = vmatprep.subr.bf16.mxu0 0
    %873 = vmatpush2.bf16.msra.mxu0 0
    %874 = vmatprep.subr.bf16.mxu0 0
    %875 = vmatpush2.bf16.msra.mxu0 0
    %876 = vmatprep.subr.bf16.mxu0 0
    %877 = vmatpush2.bf16.msra.mxu0 0
    %878 = vmatprep.subr.bf16.mxu0 0
    %879 = vmatpush2.bf16.msra.mxu0 0
    %880 = vmatprep.subr.bf16.mxu0 0
    %881 = vmatpush2.bf16.msra.mxu0 0
    %882 = vmatprep.subr.bf16.mxu0 0
    %883 = vmatpush2.bf16.msra.mxu0 0
    %884 = vmatprep.mubr.bf16.mxu0 0
    %885 = vmatmul.mubr.bf16.gmra.mxu0 %v725
    %v886 = vpop.f32.mrf.mxu0
    %v887 = vadd.f32 0.0, %v886
    %v888 = vpop.f32.mrf.mxu0
    %v889 = vpop.f32.mrf.mxu0
    %v890 = vpop.f32.mrf.mxu0
    %891 = vdwg.mxu0
    %v893 = vrot.slane %v887, 5
    %v895 = vadd.f32 %v92, %v893
    %v896 = vtanh.pop %v895
    %v897 = vadd.f32 %v896, 1.0
    %v898 = vmul.f32 %v897, 0.5
    %v900 = vrot.slane %v672, 7
    %v902 = vmul.f32 %v898, %v900
    %904 = vrot.lane.b32.xlu0 %v896, 64
    %v905 = vpop.permute.xlu0 %904
    %v907 = vmul.f32 %v898, %v905
    %909 = vrot.lane.b32.xlu0 %v907, 32
    %v910 = vpop.permute.xlu0 %909
    %v912 = vadd.f32 %v902, %v910
    %v913 = vtanh.pop %v912
    %915 = vrot.lane.b32.xlu0 %v913, 64
    %v916 = vpop.permute.xlu0 %915
    %v918 = vmul.f32 %v898, %v916
    %v919 = vpack.c.bf16 %v918, %v918
    %920 = vmatprep.subr.bf16.mxu0 0
    %921 = vmatpush1.bf16.msra.mxu0 0
    %922 = vmatprep.subr.bf16.mxu0 0
    %923 = vmatpush1.bf16.msra.mxu0 0
    %924 = vmatprep.subr.bf16.mxu0 0
    %925 = vmatpush1.bf16.msra.mxu0 0
    %926 = vmatprep.subr.bf16.mxu0 0
    %927 = vmatpush1.bf16.msra.mxu0 0
    %928 = vmatprep.subr.bf16.mxu0 0
    %929 = vmatpush1.bf16.msra.mxu0 0
    %930 = vmatprep.subr.bf16.mxu0 0
    %931 = vmatpush1.bf16.msra.mxu0 0
    %932 = vmatprep.subr.bf16.mxu0 0
    %933 = vmatpush1.bf16.msra.mxu0 %v185
    %934 = vmatprep.subr.bf16.mxu0 0
    %935 = vmatpush1.bf16.msra.mxu0 %v184
    %936 = vmatprep.subr.bf16.mxu0 0
    %937 = vmatpush2.bf16.msra.mxu0 0
    %938 = vmatprep.subr.bf16.mxu0 0
    %939 = vmatpush2.bf16.msra.mxu0 0
    %940 = vmatprep.subr.bf16.mxu0 0
    %941 = vmatpush2.bf16.msra.mxu0 0
    %942 = vmatprep.subr.bf16.mxu0 0
    %943 = vmatpush2.bf16.msra.mxu0 0
    %944 = vmatprep.subr.bf16.mxu0 0
    %945 = vmatpush2.bf16.msra.mxu0 0
    %946 = vmatprep.subr.bf16.mxu0 0
    %947 = vmatpush2.bf16.msra.mxu0 0
    %948 = vmatprep.subr.bf16.mxu0 0
    %949 = vmatpush2.bf16.msra.mxu0 0
    %950 = vmatprep.subr.bf16.mxu0 0
    %951 = vmatpush2.bf16.msra.mxu0 0
    %952 = vmatprep.mubr.bf16.mxu0 0
    %953 = vmatmul.mubr.bf16.gmra.mxu0 %v809
    %v954 = vpop.f32.mrf.mxu0
    %v955 = vadd.f32 0.0, %v954
    %v956 = vpop.f32.mrf.mxu0
    %v957 = vpop.f32.mrf.mxu0
    %v958 = vpop.f32.mrf.mxu0
    %959 = vdwg.mxu0
    %v961 = vshrl.u32 %v919, 16
    %v963 = vrot.slane %v961, 1
    %964 = vrot.lane.b32.xlu0 %v963, 32
    %v965 = vpop.permute.xlu0 %964
    %v967 = vsel %vm110, %v965, 0
    %969 = vmatprep.subr.bf16.mxu0 0
    %970 = vmatpush1.bf16.msra.mxu0 0
    %971 = vmatprep.subr.bf16.mxu0 0
    %972 = vmatpush1.bf16.msra.mxu0 0
    %973 = vmatprep.subr.bf16.mxu0 0
    %974 = vmatpush1.bf16.msra.mxu0 0
    %975 = vmatprep.subr.bf16.mxu0 0
    %976 = vmatpush1.bf16.msra.mxu0 0
    %977 = vmatprep.subr.bf16.mxu0 0
    %978 = vmatpush1.bf16.msra.mxu0 0
    %979 = vmatprep.subr.bf16.mxu0 0
    %980 = vmatpush1.bf16.msra.mxu0 0
    %981 = vmatprep.subr.bf16.mxu0 0
    %982 = vmatpush1.bf16.msra.mxu0 %v240
    %983 = vmatprep.subr.bf16.mxu0 0
    %984 = vmatpush1.bf16.msra.mxu0 %v239
    %985 = vmatprep.subr.bf16.mxu0 0
    %986 = vmatpush2.bf16.msra.mxu0 0
    %987 = vmatprep.subr.bf16.mxu0 0
    %988 = vmatpush2.bf16.msra.mxu0 0
    %989 = vmatprep.subr.bf16.mxu0 0
    %990 = vmatpush2.bf16.msra.mxu0 0
    %991 = vmatprep.subr.bf16.mxu0 0
    %992 = vmatpush2.bf16.msra.mxu0 0
    %993 = vmatprep.subr.bf16.mxu0 0
    %994 = vmatpush2.bf16.msra.mxu0 0
    %995 = vmatprep.subr.bf16.mxu0 0
    %996 = vmatpush2.bf16.msra.mxu0 0
    %997 = vmatprep.subr.bf16.mxu0 0
    %998 = vmatpush2.bf16.msra.mxu0 0
    %999 = vmatprep.subr.bf16.mxu0 0
    %1000 = vmatpush2.bf16.msra.mxu0 0
    %1001 = vmatprep.mubr.bf16.mxu0 0
    %1002 = vmatmul.mubr.bf16.gmra.mxu0 %v967
    %v1003 = vpop.f32.mrf.mxu0
    %v1004 = vadd.f32 %v955, %v1003
    %v1005 = vpop.f32.mrf.mxu0
    %v1006 = vpop.f32.mrf.mxu0
    %v1007 = vpop.f32.mrf.mxu0
    %1008 = vdwg.mxu0
    %v1009 = vadd.f32 %v1004, %v43
    %v1010 = vtanh.pop %v1009
    %v1011 = vadd.f32 %v1010, 1.0
    %v1012 = vmul.f32 %v1011, 0.5
    %v1013 = vmul.f32 %v1012, %v781
    %1015 = vrot.lane.b32.xlu0 %v1010, 64
    %v1016 = vpop.permute.xlu0 %1015
    %v1018 = vmul.f32 %v1012, %v1016
    %1020 = vrot.lane.b32.xlu0 %v1018, 32
    %v1021 = vpop.permute.xlu0 %1020
    %v1023 = vadd.f32 %v1013, %v1021
    %v1024 = vtanh.pop %v1023
    %1026 = vrot.lane.b32.xlu0 %v1024, 64
    %v1027 = vpop.permute.xlu0 %1026
    %v1029 = vmul.f32 %v1012, %v1027
    %v1030 = vpack.c.bf16 %v1029, %v1029
    %v1031 = vld [vmem:[#allocation2 + $0x64] sm:$0xf]
    %v1032 = vld [vmem:[#allocation2 + $0x68] sm:$0xf]
    %v1033 = vld [vmem:[#allocation2 + $0x6c] sm:$0xf]
    %v1034 = vld [vmem:[#allocation2 + $0x70] sm:$0xf]
    %1036 = vrot.lane.b32.xlu0 %v1030, 32
    %v1037 = vpop.permute.xlu0 %1036
    %v1042 = vunpack.c.l.b16 %v1031
    %v1043 = vunpack.c.l.b16 %v1032
    %v1044 = vunpack.c.l.b16 %v1033
    %v1045 = vunpack.c.l.b16 %v1034
    %v1046 = vpack.c.b16 %v1043, %v1042
    %v1047 = vpack.c.b16 %v1045, %v1044
    %v1051 = vsel %vm110, %v1037, 0
    %1053 = vmatprep.subr.bf16.mxu0 0
    %1054 = vmatpush1.bf16.msra.mxu0 0
    %1055 = vmatprep.subr.bf16.mxu0 0
    %1056 = vmatpush1.bf16.msra.mxu0 0
    %1057 = vmatprep.subr.bf16.mxu0 0
    %1058 = vmatpush1.bf16.msra.mxu0 0
    %1059 = vmatprep.subr.bf16.mxu0 0
    %1060 = vmatpush1.bf16.msra.mxu0 0
    %1061 = vmatprep.subr.bf16.mxu0 0
    %1062 = vmatpush1.bf16.msra.mxu0 0
    %1063 = vmatprep.subr.bf16.mxu0 0
    %1064 = vmatpush1.bf16.msra.mxu0 0
    %1065 = vmatprep.subr.bf16.mxu0 0
    %1066 = vmatpush1.bf16.msra.mxu0 %v1047
    %1067 = vmatprep.subr.bf16.mxu0 0
    %1068 = vmatpush1.bf16.msra.mxu0 %v1046
    %1069 = vmatprep.subr.bf16.mxu0 0
    %1070 = vmatpush2.bf16.msra.mxu0 0
    %1071 = vmatprep.subr.bf16.mxu0 0
    %1072 = vmatpush2.bf16.msra.mxu0 0
    %1073 = vmatprep.subr.bf16.mxu0 0
    %1074 = vmatpush2.bf16.msra.mxu0 0
    %1075 = vmatprep.subr.bf16.mxu0 0
    %1076 = vmatpush2.bf16.msra.mxu0 0
    %1077 = vmatprep.subr.bf16.mxu0 0
    %1078 = vmatpush2.bf16.msra.mxu0 0
    %1079 = vmatprep.subr.bf16.mxu0 0
    %1080 = vmatpush2.bf16.msra.mxu0 0
    %1081 = vmatprep.subr.bf16.mxu0 0
    %1082 = vmatpush2.bf16.msra.mxu0 0
    %1083 = vmatprep.subr.bf16.mxu0 0
    %1084 = vmatpush2.bf16.msra.mxu0 0
    %1085 = vmatprep.mubr.bf16.mxu0 0
    %1086 = vmatmul.mubr.bf16.gmra.mxu0 %v1051
    %v1087 = vpop.f32.mrf.mxu0
    %v1088 = vadd.f32 0.0, %v1087
    %v1089 = vpop.f32.mrf.mxu0
    %v1090 = vpop.f32.mrf.mxu0
    %v1091 = vpop.f32.mrf.mxu0
    %1092 = vdwg.mxu0
    %v1093 = vadd.f32 %v851, %v1088
    %1094 = vmatprep.subr.bf16.mxu0 0
    %1095 = vmatpush1.bf16.msra.mxu0 0
    %1096 = vmatprep.subr.bf16.mxu0 0
    %1097 = vmatpush1.bf16.msra.mxu0 0
    %1098 = vmatprep.subr.bf16.mxu0 0
    %1099 = vmatpush1.bf16.msra.mxu0 0
    %1100 = vmatprep.subr.bf16.mxu0 0
    %1101 = vmatpush1.bf16.msra.mxu0 0
    %1102 = vmatprep.subr.bf16.mxu0 0
    %1103 = vmatpush1.bf16.msra.mxu0 0
    %1104 = vmatprep.subr.bf16.mxu0 0
    %1105 = vmatpush1.bf16.msra.mxu0 0
    %1106 = vmatprep.subr.bf16.mxu0 0
    %1107 = vmatpush1.bf16.msra.mxu0 %v107
    %1108 = vmatprep.subr.bf16.mxu0 0
    %1109 = vmatpush1.bf16.msra.mxu0 %v106
    %1110 = vmatprep.subr.bf16.mxu0 0
    %1111 = vmatpush2.bf16.msra.mxu0 0
    %1112 = vmatprep.subr.bf16.mxu0 0
    %1113 = vmatpush2.bf16.msra.mxu0 0
    %1114 = vmatprep.subr.bf16.mxu0 0
    %1115 = vmatpush2.bf16.msra.mxu0 0
    %1116 = vmatprep.subr.bf16.mxu0 0
    %1117 = vmatpush2.bf16.msra.mxu0 0
    %1118 = vmatprep.subr.bf16.mxu0 0
    %1119 = vmatpush2.bf16.msra.mxu0 0
    %1120 = vmatprep.subr.bf16.mxu0 0
    %1121 = vmatpush2.bf16.msra.mxu0 0
    %1122 = vmatprep.subr.bf16.mxu0 0
    %1123 = vmatpush2.bf16.msra.mxu0 0
    %1124 = vmatprep.subr.bf16.mxu0 0
    %1125 = vmatpush2.bf16.msra.mxu0 0
    %1126 = vmatprep.mubr.bf16.mxu0 0
    %1127 = vmatmul.mubr.bf16.gmra.mxu0 %v967
    %v1128 = vpop.f32.mrf.mxu0
    %v1129 = vadd.f32 0.0, %v1128
    %v1130 = vpop.f32.mrf.mxu0
    %v1131 = vpop.f32.mrf.mxu0
    %v1132 = vpop.f32.mrf.mxu0
    %1133 = vdwg.mxu0
    %v1135 = vrot.slane %v1129, 4
    %v1137 = vadd.f32 %v92, %v1135
    %v1138 = vtanh.pop %v1137
    %v1139 = vadd.f32 %v1138, 1.0
    %v1140 = vmul.f32 %v1139, 0.5
    %v1142 = vrot.slane %v912, 7
    %v1144 = vmul.f32 %v1140, %v1142
    %1146 = vrot.lane.b32.xlu0 %v1138, 64
    %v1147 = vpop.permute.xlu0 %1146
    %v1149 = vmul.f32 %v1140, %v1147
    %1151 = vrot.lane.b32.xlu0 %v1149, 32
    %v1152 = vpop.permute.xlu0 %1151
    %v1154 = vadd.f32 %v1144, %v1152
    %v1155 = vtanh.pop %v1154
    %1157 = vrot.lane.b32.xlu0 %v1155, 64
    %v1158 = vpop.permute.xlu0 %1157
    %v1160 = vmul.f32 %v1140, %v1158
    %v1161 = vpack.c.bf16 %v1160, %v1160
    %1162 = vmatprep.subr.bf16.mxu0 0
    %1163 = vmatpush1.bf16.msra.mxu0 0
    %1164 = vmatprep.subr.bf16.mxu0 0
    %1165 = vmatpush1.bf16.msra.mxu0 0
    %1166 = vmatprep.subr.bf16.mxu0 0
    %1167 = vmatpush1.bf16.msra.mxu0 0
    %1168 = vmatprep.subr.bf16.mxu0 0
    %1169 = vmatpush1.bf16.msra.mxu0 0
    %1170 = vmatprep.subr.bf16.mxu0 0
    %1171 = vmatpush1.bf16.msra.mxu0 0
    %1172 = vmatprep.subr.bf16.mxu0 0
    %1173 = vmatpush1.bf16.msra.mxu0 0
    %1174 = vmatprep.subr.bf16.mxu0 0
    %1175 = vmatpush1.bf16.msra.mxu0 %v185
    %1176 = vmatprep.subr.bf16.mxu0 0
    %1177 = vmatpush1.bf16.msra.mxu0 %v184
    %1178 = vmatprep.subr.bf16.mxu0 0
    %1179 = vmatpush2.bf16.msra.mxu0 0
    %1180 = vmatprep.subr.bf16.mxu0 0
    %1181 = vmatpush2.bf16.msra.mxu0 0
    %1182 = vmatprep.subr.bf16.mxu0 0
    %1183 = vmatpush2.bf16.msra.mxu0 0
    %1184 = vmatprep.subr.bf16.mxu0 0
    %1185 = vmatpush2.bf16.msra.mxu0 0
    %1186 = vmatprep.subr.bf16.mxu0 0
    %1187 = vmatpush2.bf16.msra.mxu0 0
    %1188 = vmatprep.subr.bf16.mxu0 0
    %1189 = vmatpush2.bf16.msra.mxu0 0
    %1190 = vmatprep.subr.bf16.mxu0 0
    %1191 = vmatpush2.bf16.msra.mxu0 0
    %1192 = vmatprep.subr.bf16.mxu0 0
    %1193 = vmatpush2.bf16.msra.mxu0 0
    %1194 = vmatprep.mubr.bf16.mxu0 0
    %1195 = vmatmul.mubr.bf16.gmra.mxu0 %v1051
    %v1196 = vpop.f32.mrf.mxu0
    %v1197 = vadd.f32 0.0, %v1196
    %v1198 = vpop.f32.mrf.mxu0
    %v1199 = vpop.f32.mrf.mxu0
    %v1200 = vpop.f32.mrf.mxu0
    %1201 = vdwg.mxu0
    %v1203 = vrot.slane %v1161, 2
    %1204 = vrot.lane.b32.xlu0 %v1203, 32
    %v1205 = vpop.permute.xlu0 %1204
    %v1207 = vsel %vm110, %v1205, 0
    %1209 = vmatprep.subr.bf16.mxu0 0
    %1210 = vmatpush1.bf16.msra.mxu0 0
    %1211 = vmatprep.subr.bf16.mxu0 0
    %1212 = vmatpush1.bf16.msra.mxu0 0
    %1213 = vmatprep.subr.bf16.mxu0 0
    %1214 = vmatpush1.bf16.msra.mxu0 0
    %1215 = vmatprep.subr.bf16.mxu0 0
    %1216 = vmatpush1.bf16.msra.mxu0 0
    %1217 = vmatprep.subr.bf16.mxu0 0
    %1218 = vmatpush1.bf16.msra.mxu0 0
    %1219 = vmatprep.subr.bf16.mxu0 0
    %1220 = vmatpush1.bf16.msra.mxu0 0
    %1221 = vmatprep.subr.bf16.mxu0 0
    %1222 = vmatpush1.bf16.msra.mxu0 %v240
    %1223 = vmatprep.subr.bf16.mxu0 0
    %1224 = vmatpush1.bf16.msra.mxu0 %v239
    %1225 = vmatprep.subr.bf16.mxu0 0
    %1226 = vmatpush2.bf16.msra.mxu0 0
    %1227 = vmatprep.subr.bf16.mxu0 0
    %1228 = vmatpush2.bf16.msra.mxu0 0
    %1229 = vmatprep.subr.bf16.mxu0 0
    %1230 = vmatpush2.bf16.msra.mxu0 0
    %1231 = vmatprep.subr.bf16.mxu0 0
    %1232 = vmatpush2.bf16.msra.mxu0 0
    %1233 = vmatprep.subr.bf16.mxu0 0
    %1234 = vmatpush2.bf16.msra.mxu0 0
    %1235 = vmatprep.subr.bf16.mxu0 0
    %1236 = vmatpush2.bf16.msra.mxu0 0
    %1237 = vmatprep.subr.bf16.mxu0 0
    %1238 = vmatpush2.bf16.msra.mxu0 0
    %1239 = vmatprep.subr.bf16.mxu0 0
    %1240 = vmatpush2.bf16.msra.mxu0 0
    %1241 = vmatprep.mubr.bf16.mxu0 0
    %1242 = vmatmul.mubr.bf16.gmra.mxu0 %v1207
    %v1243 = vpop.f32.mrf.mxu0
    %v1244 = vadd.f32 %v1197, %v1243
    %v1245 = vpop.f32.mrf.mxu0
    %v1246 = vpop.f32.mrf.mxu0
    %v1247 = vpop.f32.mrf.mxu0
    %1248 = vdwg.mxu0
    %v1249 = vadd.f32 %v1244, %v43
    %v1250 = vtanh.pop %v1249
    %v1251 = vadd.f32 %v1250, 1.0
    %v1252 = vmul.f32 %v1251, 0.5
    %v1253 = vmul.f32 %v1252, %v1023
    %1255 = vrot.lane.b32.xlu0 %v1250, 64
    %v1256 = vpop.permute.xlu0 %1255
    %v1258 = vmul.f32 %v1252, %v1256
    %1260 = vrot.lane.b32.xlu0 %v1258, 32
    %v1261 = vpop.permute.xlu0 %1260
    %v1263 = vadd.f32 %v1253, %v1261
    %v1264 = vtanh.pop %v1263
    %1266 = vrot.lane.b32.xlu0 %v1264, 64
    %v1267 = vpop.permute.xlu0 %1266
    %v1269 = vmul.f32 %v1252, %v1267
    %v1270 = vpack.c.bf16 %v1269, %v1269
    %v1271 = vld [vmem:[#allocation2 + $0x74] sm:$0xf]
    %v1272 = vld [vmem:[#allocation2 + $0x78] sm:$0xf]
    %v1273 = vld [vmem:[#allocation2 + $0x7c] sm:$0xf]
    %v1274 = vld [vmem:[#allocation2 + $0x80] sm:$0xf]
    %1276 = vrot.lane.b32.xlu0 %v1270, 32
    %v1277 = vpop.permute.xlu0 %1276
    %v1282 = vunpack.c.l.b16 %v1271
    %v1283 = vunpack.c.l.b16 %v1272
    %v1284 = vunpack.c.l.b16 %v1273
    %v1285 = vunpack.c.l.b16 %v1274
    %v1286 = vpack.c.b16 %v1283, %v1282
    %v1287 = vpack.c.b16 %v1285, %v1284
    %v1291 = vsel %vm110, %v1277, 0
    %1293 = vmatprep.subr.bf16.mxu0 0
    %1294 = vmatpush1.bf16.msra.mxu0 0
    %1295 = vmatprep.subr.bf16.mxu0 0
    %1296 = vmatpush1.bf16.msra.mxu0 0
    %1297 = vmatprep.subr.bf16.mxu0 0
    %1298 = vmatpush1.bf16.msra.mxu0 0
    %1299 = vmatprep.subr.bf16.mxu0 0
    %1300 = vmatpush1.bf16.msra.mxu0 0
    %1301 = vmatprep.subr.bf16.mxu0 0
    %1302 = vmatpush1.bf16.msra.mxu0 0
    %1303 = vmatprep.subr.bf16.mxu0 0
    %1304 = vmatpush1.bf16.msra.mxu0 0
    %1305 = vmatprep.subr.bf16.mxu0 0
    %1306 = vmatpush1.bf16.msra.mxu0 %v1287
    %1307 = vmatprep.subr.bf16.mxu0 0
    %1308 = vmatpush1.bf16.msra.mxu0 %v1286
    %1309 = vmatprep.subr.bf16.mxu0 0
    %1310 = vmatpush2.bf16.msra.mxu0 0
    %1311 = vmatprep.subr.bf16.mxu0 0
    %1312 = vmatpush2.bf16.msra.mxu0 0
    %1313 = vmatprep.subr.bf16.mxu0 0
    %1314 = vmatpush2.bf16.msra.mxu0 0
    %1315 = vmatprep.subr.bf16.mxu0 0
    %1316 = vmatpush2.bf16.msra.mxu0 0
    %1317 = vmatprep.subr.bf16.mxu0 0
    %1318 = vmatpush2.bf16.msra.mxu0 0
    %1319 = vmatprep.subr.bf16.mxu0 0
    %1320 = vmatpush2.bf16.msra.mxu0 0
    %1321 = vmatprep.subr.bf16.mxu0 0
    %1322 = vmatpush2.bf16.msra.mxu0 0
    %1323 = vmatprep.subr.bf16.mxu0 0
    %1324 = vmatpush2.bf16.msra.mxu0 0
    %1325 = vmatprep.mubr.bf16.mxu0 0
    %1326 = vmatmul.mubr.bf16.gmra.mxu0 %v1291
    %v1327 = vpop.f32.mrf.mxu0
    %v1328 = vadd.f32 0.0, %v1327
    %v1329 = vpop.f32.mrf.mxu0
    %v1330 = vpop.f32.mrf.mxu0
    %v1331 = vpop.f32.mrf.mxu0
    %1332 = vdwg.mxu0
    %v1333 = vadd.f32 %v1093, %v1328
    %1334 = vmatprep.subr.bf16.mxu0 0
    %1335 = vmatpush1.bf16.msra.mxu0 0
    %1336 = vmatprep.subr.bf16.mxu0 0
    %1337 = vmatpush1.bf16.msra.mxu0 0
    %1338 = vmatprep.subr.bf16.mxu0 0
    %1339 = vmatpush1.bf16.msra.mxu0 0
    %1340 = vmatprep.subr.bf16.mxu0 0
    %1341 = vmatpush1.bf16.msra.mxu0 0
    %1342 = vmatprep.subr.bf16.mxu0 0
    %1343 = vmatpush1.bf16.msra.mxu0 0
    %1344 = vmatprep.subr.bf16.mxu0 0
    %1345 = vmatpush1.bf16.msra.mxu0 0
    %1346 = vmatprep.subr.bf16.mxu0 0
    %1347 = vmatpush1.bf16.msra.mxu0 %v107
    %1348 = vmatprep.subr.bf16.mxu0 0
    %1349 = vmatpush1.bf16.msra.mxu0 %v106
    %1350 = vmatprep.subr.bf16.mxu0 0
    %1351 = vmatpush2.bf16.msra.mxu0 0
    %1352 = vmatprep.subr.bf16.mxu0 0
    %1353 = vmatpush2.bf16.msra.mxu0 0
    %1354 = vmatprep.subr.bf16.mxu0 0
    %1355 = vmatpush2.bf16.msra.mxu0 0
    %1356 = vmatprep.subr.bf16.mxu0 0
    %1357 = vmatpush2.bf16.msra.mxu0 0
    %1358 = vmatprep.subr.bf16.mxu0 0
    %1359 = vmatpush2.bf16.msra.mxu0 0
    %1360 = vmatprep.subr.bf16.mxu0 0
    %1361 = vmatpush2.bf16.msra.mxu0 0
    %1362 = vmatprep.subr.bf16.mxu0 0
    %1363 = vmatpush2.bf16.msra.mxu0 0
    %1364 = vmatprep.subr.bf16.mxu0 0
    %1365 = vmatpush2.bf16.msra.mxu0 0
    %1366 = vmatprep.mubr.bf16.mxu0 0
    %1367 = vmatmul.mubr.bf16.gmra.mxu0 %v1207
    %v1368 = vpop.f32.mrf.mxu0
    %v1369 = vadd.f32 0.0, %v1368
    %v1370 = vpop.f32.mrf.mxu0
    %v1371 = vpop.f32.mrf.mxu0
    %v1372 = vpop.f32.mrf.mxu0
    %1373 = vdwg.mxu0
    %v1375 = vrot.slane %v1369, 3
    %v1377 = vadd.f32 %v92, %v1375
    %v1378 = vtanh.pop %v1377
    %v1379 = vadd.f32 %v1378, 1.0
    %v1380 = vmul.f32 %v1379, 0.5
    %v1382 = vrot.slane %v1154, 7
    %v1384 = vmul.f32 %v1380, %v1382
    %1386 = vrot.lane.b32.xlu0 %v1378, 64
    %v1387 = vpop.permute.xlu0 %1386
    %v1389 = vmul.f32 %v1380, %v1387
    %1391 = vrot.lane.b32.xlu0 %v1389, 32
    %v1392 = vpop.permute.xlu0 %1391
    %v1394 = vadd.f32 %v1384, %v1392
    %v1395 = vtanh.pop %v1394
    %1397 = vrot.lane.b32.xlu0 %v1395, 64
    %v1398 = vpop.permute.xlu0 %1397
    %v1400 = vmul.f32 %v1380, %v1398
    %v1401 = vpack.c.bf16 %v1400, %v1400
    %1402 = vmatprep.subr.bf16.mxu0 0
    %1403 = vmatpush1.bf16.msra.mxu0 0
    %1404 = vmatprep.subr.bf16.mxu0 0
    %1405 = vmatpush1.bf16.msra.mxu0 0
    %1406 = vmatprep.subr.bf16.mxu0 0
    %1407 = vmatpush1.bf16.msra.mxu0 0
    %1408 = vmatprep.subr.bf16.mxu0 0
    %1409 = vmatpush1.bf16.msra.mxu0 0
    %1410 = vmatprep.subr.bf16.mxu0 0
    %1411 = vmatpush1.bf16.msra.mxu0 0
    %1412 = vmatprep.subr.bf16.mxu0 0
    %1413 = vmatpush1.bf16.msra.mxu0 0
    %1414 = vmatprep.subr.bf16.mxu0 0
    %1415 = vmatpush1.bf16.msra.mxu0 %v185
    %1416 = vmatprep.subr.bf16.mxu0 0
    %1417 = vmatpush1.bf16.msra.mxu0 %v184
    %1418 = vmatprep.subr.bf16.mxu0 0
    %1419 = vmatpush2.bf16.msra.mxu0 0
    %1420 = vmatprep.subr.bf16.mxu0 0
    %1421 = vmatpush2.bf16.msra.mxu0 0
    %1422 = vmatprep.subr.bf16.mxu0 0
    %1423 = vmatpush2.bf16.msra.mxu0 0
    %1424 = vmatprep.subr.bf16.mxu0 0
    %1425 = vmatpush2.bf16.msra.mxu0 0
    %1426 = vmatprep.subr.bf16.mxu0 0
    %1427 = vmatpush2.bf16.msra.mxu0 0
    %1428 = vmatprep.subr.bf16.mxu0 0
    %1429 = vmatpush2.bf16.msra.mxu0 0
    %1430 = vmatprep.subr.bf16.mxu0 0
    %1431 = vmatpush2.bf16.msra.mxu0 0
    %1432 = vmatprep.subr.bf16.mxu0 0
    %1433 = vmatpush2.bf16.msra.mxu0 0
    %1434 = vmatprep.mubr.bf16.mxu0 0
    %1435 = vmatmul.mubr.bf16.gmra.mxu0 %v1291
    %v1436 = vpop.f32.mrf.mxu0
    %v1437 = vadd.f32 0.0, %v1436
    %v1438 = vpop.f32.mrf.mxu0
    %v1439 = vpop.f32.mrf.mxu0
    %v1440 = vpop.f32.mrf.mxu0
    %1441 = vdwg.mxu0
    %v1443 = vshrl.u32 %v1401, 16
    %v1445 = vrot.slane %v1443, 2
    %1446 = vrot.lane.b32.xlu0 %v1445, 32
    %v1447 = vpop.permute.xlu0 %1446
    %v1449 = vsel %vm110, %v1447, 0
    %1451 = vmatprep.subr.bf16.mxu0 0
    %1452 = vmatpush1.bf16.msra.mxu0 0
    %1453 = vmatprep.subr.bf16.mxu0 0
    %1454 = vmatpush1.bf16.msra.mxu0 0
    %1455 = vmatprep.subr.bf16.mxu0 0
    %1456 = vmatpush1.bf16.msra.mxu0 0
    %1457 = vmatprep.subr.bf16.mxu0 0
    %1458 = vmatpush1.bf16.msra.mxu0 0
    %1459 = vmatprep.subr.bf16.mxu0 0
    %1460 = vmatpush1.bf16.msra.mxu0 0
    %1461 = vmatprep.subr.bf16.mxu0 0
    %1462 = vmatpush1.bf16.msra.mxu0 0
    %1463 = vmatprep.subr.bf16.mxu0 0
    %1464 = vmatpush1.bf16.msra.mxu0 %v240
    %1465 = vmatprep.subr.bf16.mxu0 0
    %1466 = vmatpush1.bf16.msra.mxu0 %v239
    %1467 = vmatprep.subr.bf16.mxu0 0
    %1468 = vmatpush2.bf16.msra.mxu0 0
    %1469 = vmatprep.subr.bf16.mxu0 0
    %1470 = vmatpush2.bf16.msra.mxu0 0
    %1471 = vmatprep.subr.bf16.mxu0 0
    %1472 = vmatpush2.bf16.msra.mxu0 0
    %1473 = vmatprep.subr.bf16.mxu0 0
    %1474 = vmatpush2.bf16.msra.mxu0 0
    %1475 = vmatprep.subr.bf16.mxu0 0
    %1476 = vmatpush2.bf16.msra.mxu0 0
    %1477 = vmatprep.subr.bf16.mxu0 0
    %1478 = vmatpush2.bf16.msra.mxu0 0
    %1479 = vmatprep.subr.bf16.mxu0 0
    %1480 = vmatpush2.bf16.msra.mxu0 0
    %1481 = vmatprep.subr.bf16.mxu0 0
    %1482 = vmatpush2.bf16.msra.mxu0 0
    %1483 = vmatprep.mubr.bf16.mxu0 0
    %1484 = vmatmul.mubr.bf16.gmra.mxu0 %v1449
    %v1485 = vpop.f32.mrf.mxu0
    %v1486 = vadd.f32 %v1437, %v1485
    %v1487 = vpop.f32.mrf.mxu0
    %v1488 = vpop.f32.mrf.mxu0
    %v1489 = vpop.f32.mrf.mxu0
    %1490 = vdwg.mxu0
    %v1491 = vadd.f32 %v1486, %v43
    %v1492 = vtanh.pop %v1491
    %v1493 = vadd.f32 %v1492, 1.0
    %v1494 = vmul.f32 %v1493, 0.5
    %v1495 = vmul.f32 %v1494, %v1263
    %1497 = vrot.lane.b32.xlu0 %v1492, 64
    %v1498 = vpop.permute.xlu0 %1497
    %v1500 = vmul.f32 %v1494, %v1498
    %1502 = vrot.lane.b32.xlu0 %v1500, 32
    %v1503 = vpop.permute.xlu0 %1502
    %v1505 = vadd.f32 %v1495, %v1503
    %v1506 = vtanh.pop %v1505
    %1508 = vrot.lane.b32.xlu0 %v1506, 64
    %v1509 = vpop.permute.xlu0 %1508
    %v1511 = vmul.f32 %v1494, %v1509
    %v1512 = vpack.c.bf16 %v1511, %v1511
    %v1513 = vld [vmem:[#allocation2 + $0x84] sm:$0xf]
    %v1514 = vld [vmem:[#allocation2 + $0x88] sm:$0xf]
    %v1515 = vld [vmem:[#allocation2 + $0x8c] sm:$0xf]
    %v1516 = vld [vmem:[#allocation2 + $0x90] sm:$0xf]
    %1518 = vrot.lane.b32.xlu0 %v1512, 32
    %v1519 = vpop.permute.xlu0 %1518
    %v1524 = vunpack.c.l.b16 %v1513
    %v1525 = vunpack.c.l.b16 %v1514
    %v1526 = vunpack.c.l.b16 %v1515
    %v1527 = vunpack.c.l.b16 %v1516
    %v1528 = vpack.c.b16 %v1525, %v1524
    %v1529 = vpack.c.b16 %v1527, %v1526
    %v1533 = vsel %vm110, %v1519, 0
    %1535 = vmatprep.subr.bf16.mxu0 0
    %1536 = vmatpush1.bf16.msra.mxu0 0
    %1537 = vmatprep.subr.bf16.mxu0 0
    %1538 = vmatpush1.bf16.msra.mxu0 0
    %1539 = vmatprep.subr.bf16.mxu0 0
    %1540 = vmatpush1.bf16.msra.mxu0 0
    %1541 = vmatprep.subr.bf16.mxu0 0
    %1542 = vmatpush1.bf16.msra.mxu0 0
    %1543 = vmatprep.subr.bf16.mxu0 0
    %1544 = vmatpush1.bf16.msra.mxu0 0
    %1545 = vmatprep.subr.bf16.mxu0 0
    %1546 = vmatpush1.bf16.msra.mxu0 0
    %1547 = vmatprep.subr.bf16.mxu0 0
    %1548 = vmatpush1.bf16.msra.mxu0 %v1529
    %1549 = vmatprep.subr.bf16.mxu0 0
    %1550 = vmatpush1.bf16.msra.mxu0 %v1528
    %1551 = vmatprep.subr.bf16.mxu0 0
    %1552 = vmatpush2.bf16.msra.mxu0 0
    %1553 = vmatprep.subr.bf16.mxu0 0
    %1554 = vmatpush2.bf16.msra.mxu0 0
    %1555 = vmatprep.subr.bf16.mxu0 0
    %1556 = vmatpush2.bf16.msra.mxu0 0
    %1557 = vmatprep.subr.bf16.mxu0 0
    %1558 = vmatpush2.bf16.msra.mxu0 0
    %1559 = vmatprep.subr.bf16.mxu0 0
    %1560 = vmatpush2.bf16.msra.mxu0 0
    %1561 = vmatprep.subr.bf16.mxu0 0
    %1562 = vmatpush2.bf16.msra.mxu0 0
    %1563 = vmatprep.subr.bf16.mxu0 0
    %1564 = vmatpush2.bf16.msra.mxu0 0
    %1565 = vmatprep.subr.bf16.mxu0 0
    %1566 = vmatpush2.bf16.msra.mxu0 0
    %1567 = vmatprep.mubr.bf16.mxu0 0
    %1568 = vmatmul.mubr.bf16.gmra.mxu0 %v1533
    %v1569 = vpop.f32.mrf.mxu0
    %v1570 = vadd.f32 0.0, %v1569
    %v1571 = vpop.f32.mrf.mxu0
    %v1572 = vpop.f32.mrf.mxu0
    %v1573 = vpop.f32.mrf.mxu0
    %1574 = vdwg.mxu0
    %v1575 = vadd.f32 %v1333, %v1570
    %1576 = vmatprep.subr.bf16.mxu0 0
    %1577 = vmatpush1.bf16.msra.mxu0 0
    %1578 = vmatprep.subr.bf16.mxu0 0
    %1579 = vmatpush1.bf16.msra.mxu0 0
    %1580 = vmatprep.subr.bf16.mxu0 0
    %1581 = vmatpush1.bf16.msra.mxu0 0
    %1582 = vmatprep.subr.bf16.mxu0 0
    %1583 = vmatpush1.bf16.msra.mxu0 0
    %1584 = vmatprep.subr.bf16.mxu0 0
    %1585 = vmatpush1.bf16.msra.mxu0 0
    %1586 = vmatprep.subr.bf16.mxu0 0
    %1587 = vmatpush1.bf16.msra.mxu0 0
    %1588 = vmatprep.subr.bf16.mxu0 0
    %1589 = vmatpush1.bf16.msra.mxu0 %v107
    %1590 = vmatprep.subr.bf16.mxu0 0
    %1591 = vmatpush1.bf16.msra.mxu0 %v106
    %1592 = vmatprep.subr.bf16.mxu0 0
    %1593 = vmatpush2.bf16.msra.mxu0 0
    %1594 = vmatprep.subr.bf16.mxu0 0
    %1595 = vmatpush2.bf16.msra.mxu0 0
    %1596 = vmatprep.subr.bf16.mxu0 0
    %1597 = vmatpush2.bf16.msra.mxu0 0
    %1598 = vmatprep.subr.bf16.mxu0 0
    %1599 = vmatpush2.bf16.msra.mxu0 0
    %1600 = vmatprep.subr.bf16.mxu0 0
    %1601 = vmatpush2.bf16.msra.mxu0 0
    %1602 = vmatprep.subr.bf16.mxu0 0
    %1603 = vmatpush2.bf16.msra.mxu0 0
    %1604 = vmatprep.subr.bf16.mxu0 0
    %1605 = vmatpush2.bf16.msra.mxu0 0
    %1606 = vmatprep.subr.bf16.mxu0 0
    %1607 = vmatpush2.bf16.msra.mxu0 0
    %1608 = vmatprep.mubr.bf16.mxu0 0
    %1609 = vmatmul.mubr.bf16.gmra.mxu0 %v1449
    %v1610 = vpop.f32.mrf.mxu0
    %v1611 = vadd.f32 0.0, %v1610
    %v1612 = vpop.f32.mrf.mxu0
    %v1613 = vpop.f32.mrf.mxu0
    %v1614 = vpop.f32.mrf.mxu0
    %1615 = vdwg.mxu0
    %v1617 = vrot.slane %v1611, 2
    %v1619 = vadd.f32 %v92, %v1617
    %v1620 = vtanh.pop %v1619
    %v1621 = vadd.f32 %v1620, 1.0
    %v1622 = vmul.f32 %v1621, 0.5
    %v1624 = vrot.slane %v1394, 7
    %v1626 = vmul.f32 %v1622, %v1624
    %1628 = vrot.lane.b32.xlu0 %v1620, 64
    %v1629 = vpop.permute.xlu0 %1628
    %v1631 = vmul.f32 %v1622, %v1629
    %1633 = vrot.lane.b32.xlu0 %v1631, 32
    %v1634 = vpop.permute.xlu0 %1633
    %v1636 = vadd.f32 %v1626, %v1634
    %v1637 = vtanh.pop %v1636
    %1639 = vrot.lane.b32.xlu0 %v1637, 64
    %v1640 = vpop.permute.xlu0 %1639
    %v1642 = vmul.f32 %v1622, %v1640
    %v1643 = vpack.c.bf16 %v1642, %v1642
    %1644 = vmatprep.subr.bf16.mxu0 0
    %1645 = vmatpush1.bf16.msra.mxu0 0
    %1646 = vmatprep.subr.bf16.mxu0 0
    %1647 = vmatpush1.bf16.msra.mxu0 0
    %1648 = vmatprep.subr.bf16.mxu0 0
    %1649 = vmatpush1.bf16.msra.mxu0 0
    %1650 = vmatprep.subr.bf16.mxu0 0
    %1651 = vmatpush1.bf16.msra.mxu0 0
    %1652 = vmatprep.subr.bf16.mxu0 0
    %1653 = vmatpush1.bf16.msra.mxu0 0
    %1654 = vmatprep.subr.bf16.mxu0 0
    %1655 = vmatpush1.bf16.msra.mxu0 0
    %1656 = vmatprep.subr.bf16.mxu0 0
    %1657 = vmatpush1.bf16.msra.mxu0 %v185
    %1658 = vmatprep.subr.bf16.mxu0 0
    %1659 = vmatpush1.bf16.msra.mxu0 %v184
    %1660 = vmatprep.subr.bf16.mxu0 0
    %1661 = vmatpush2.bf16.msra.mxu0 0
    %1662 = vmatprep.subr.bf16.mxu0 0
    %1663 = vmatpush2.bf16.msra.mxu0 0
    %1664 = vmatprep.subr.bf16.mxu0 0
    %1665 = vmatpush2.bf16.msra.mxu0 0
    %1666 = vmatprep.subr.bf16.mxu0 0
    %1667 = vmatpush2.bf16.msra.mxu0 0
    %1668 = vmatprep.subr.bf16.mxu0 0
    %1669 = vmatpush2.bf16.msra.mxu0 0
    %1670 = vmatprep.subr.bf16.mxu0 0
    %1671 = vmatpush2.bf16.msra.mxu0 0
    %1672 = vmatprep.subr.bf16.mxu0 0
    %1673 = vmatpush2.bf16.msra.mxu0 0
    %1674 = vmatprep.subr.bf16.mxu0 0
    %1675 = vmatpush2.bf16.msra.mxu0 0
    %1676 = vmatprep.mubr.bf16.mxu0 0
    %1677 = vmatmul.mubr.bf16.gmra.mxu0 %v1533
    %v1678 = vpop.f32.mrf.mxu0
    %v1679 = vadd.f32 0.0, %v1678
    %v1680 = vpop.f32.mrf.mxu0
    %v1681 = vpop.f32.mrf.mxu0
    %v1682 = vpop.f32.mrf.mxu0
    %1683 = vdwg.mxu0
    %v1685 = vrot.slane %v1643, 3
    %1686 = vrot.lane.b32.xlu0 %v1685, 32
    %v1687 = vpop.permute.xlu0 %1686
    %v1689 = vsel %vm110, %v1687, 0
    %1691 = vmatprep.subr.bf16.mxu0 0
    %1692 = vmatpush1.bf16.msra.mxu0 0
    %1693 = vmatprep.subr.bf16.mxu0 0
    %1694 = vmatpush1.bf16.msra.mxu0 0
    %1695 = vmatprep.subr.bf16.mxu0 0
    %1696 = vmatpush1.bf16.msra.mxu0 0
    %1697 = vmatprep.subr.bf16.mxu0 0
    %1698 = vmatpush1.bf16.msra.mxu0 0
    %1699 = vmatprep.subr.bf16.mxu0 0
    %1700 = vmatpush1.bf16.msra.mxu0 0
    %1701 = vmatprep.subr.bf16.mxu0 0
    %1702 = vmatpush1.bf16.msra.mxu0 0
    %1703 = vmatprep.subr.bf16.mxu0 0
    %1704 = vmatpush1.bf16.msra.mxu0 %v240
    %1705 = vmatprep.subr.bf16.mxu0 0
    %1706 = vmatpush1.bf16.msra.mxu0 %v239
    %1707 = vmatprep.subr.bf16.mxu0 0
    %1708 = vmatpush2.bf16.msra.mxu0 0
    %1709 = vmatprep.subr.bf16.mxu0 0
    %1710 = vmatpush2.bf16.msra.mxu0 0
    %1711 = vmatprep.subr.bf16.mxu0 0
    %1712 = vmatpush2.bf16.msra.mxu0 0
    %1713 = vmatprep.subr.bf16.mxu0 0
    %1714 = vmatpush2.bf16.msra.mxu0 0
    %1715 = vmatprep.subr.bf16.mxu0 0
    %1716 = vmatpush2.bf16.msra.mxu0 0
    %1717 = vmatprep.subr.bf16.mxu0 0
    %1718 = vmatpush2.bf16.msra.mxu0 0
    %1719 = vmatprep.subr.bf16.mxu0 0
    %1720 = vmatpush2.bf16.msra.mxu0 0
    %1721 = vmatprep.subr.bf16.mxu0 0
    %1722 = vmatpush2.bf16.msra.mxu0 0
    %1723 = vmatprep.mubr.bf16.mxu0 0
    %1724 = vmatmul.mubr.bf16.gmra.mxu0 %v1689
    %v1725 = vpop.f32.mrf.mxu0
    %v1726 = vadd.f32 %v1679, %v1725
    %v1727 = vpop.f32.mrf.mxu0
    %v1728 = vpop.f32.mrf.mxu0
    %v1729 = vpop.f32.mrf.mxu0
    %1730 = vdwg.mxu0
    %v1731 = vadd.f32 %v1726, %v43
    %v1732 = vtanh.pop %v1731
    %v1733 = vadd.f32 %v1732, 1.0
    %v1734 = vmul.f32 %v1733, 0.5
    %v1735 = vmul.f32 %v1734, %v1505
    %1737 = vrot.lane.b32.xlu0 %v1732, 64
    %v1738 = vpop.permute.xlu0 %1737
    %v1740 = vmul.f32 %v1734, %v1738
    %1742 = vrot.lane.b32.xlu0 %v1740, 32
    %v1743 = vpop.permute.xlu0 %1742
    %v1745 = vadd.f32 %v1735, %v1743
    %v1746 = vtanh.pop %v1745
    %1748 = vrot.lane.b32.xlu0 %v1746, 64
    %v1749 = vpop.permute.xlu0 %1748
    %v1751 = vmul.f32 %v1734, %v1749
    %v1752 = vpack.c.bf16 %v1751, %v1751
    %v1753 = vld [vmem:[#allocation2 + $0x94] sm:$0xf]
    %v1754 = vld [vmem:[#allocation2 + $0x98] sm:$0xf]
    %v1755 = vld [vmem:[#allocation2 + $0x9c] sm:$0xf]
    %v1756 = vld [vmem:[#allocation2 + $0xa0] sm:$0xf]
    %1758 = vrot.lane.b32.xlu0 %v1752, 32
    %v1759 = vpop.permute.xlu0 %1758
    %v1764 = vunpack.c.l.b16 %v1753
    %v1765 = vunpack.c.l.b16 %v1754
    %v1766 = vunpack.c.l.b16 %v1755
    %v1767 = vunpack.c.l.b16 %v1756
    %v1768 = vpack.c.b16 %v1765, %v1764
    %v1769 = vpack.c.b16 %v1767, %v1766
    %v1773 = vsel %vm110, %v1759, 0
    %1775 = vmatprep.subr.bf16.mxu0 0
    %1776 = vmatpush1.bf16.msra.mxu0 0
    %1777 = vmatprep.subr.bf16.mxu0 0
    %1778 = vmatpush1.bf16.msra.mxu0 0
    %1779 = vmatprep.subr.bf16.mxu0 0
    %1780 = vmatpush1.bf16.msra.mxu0 0
    %1781 = vmatprep.subr.bf16.mxu0 0
    %1782 = vmatpush1.bf16.msra.mxu0 0
    %1783 = vmatprep.subr.bf16.mxu0 0
    %1784 = vmatpush1.bf16.msra.mxu0 0
    %1785 = vmatprep.subr.bf16.mxu0 0
    %1786 = vmatpush1.bf16.msra.mxu0 0
    %1787 = vmatprep.subr.bf16.mxu0 0
    %1788 = vmatpush1.bf16.msra.mxu0 %v1769
    %1789 = vmatprep.subr.bf16.mxu0 0
    %1790 = vmatpush1.bf16.msra.mxu0 %v1768
    %1791 = vmatprep.subr.bf16.mxu0 0
    %1792 = vmatpush2.bf16.msra.mxu0 0
    %1793 = vmatprep.subr.bf16.mxu0 0
    %1794 = vmatpush2.bf16.msra.mxu0 0
    %1795 = vmatprep.subr.bf16.mxu0 0
    %1796 = vmatpush2.bf16.msra.mxu0 0
    %1797 = vmatprep.subr.bf16.mxu0 0
    %1798 = vmatpush2.bf16.msra.mxu0 0
    %1799 = vmatprep.subr.bf16.mxu0 0
    %1800 = vmatpush2.bf16.msra.mxu0 0
    %1801 = vmatprep.subr.bf16.mxu0 0
    %1802 = vmatpush2.bf16.msra.mxu0 0
    %1803 = vmatprep.subr.bf16.mxu0 0
    %1804 = vmatpush2.bf16.msra.mxu0 0
    %1805 = vmatprep.subr.bf16.mxu0 0
    %1806 = vmatpush2.bf16.msra.mxu0 0
    %1807 = vmatprep.mubr.bf16.mxu0 0
    %1808 = vmatmul.mubr.bf16.gmra.mxu0 %v1773
    %v1809 = vpop.f32.mrf.mxu0
    %v1810 = vadd.f32 0.0, %v1809
    %v1811 = vpop.f32.mrf.mxu0
    %v1812 = vpop.f32.mrf.mxu0
    %v1813 = vpop.f32.mrf.mxu0
    %1814 = vdwg.mxu0
    %v1815 = vadd.f32 %v1575, %v1810
    %1816 = vmatprep.subr.bf16.mxu0 0
    %1817 = vmatpush1.bf16.msra.mxu0 0
    %1818 = vmatprep.subr.bf16.mxu0 0
    %1819 = vmatpush1.bf16.msra.mxu0 0
    %1820 = vmatprep.subr.bf16.mxu0 0
    %1821 = vmatpush1.bf16.msra.mxu0 0
    %1822 = vmatprep.subr.bf16.mxu0 0
    %1823 = vmatpush1.bf16.msra.mxu0 0
    %1824 = vmatprep.subr.bf16.mxu0 0
    %1825 = vmatpush1.bf16.msra.mxu0 0
    %1826 = vmatprep.subr.bf16.mxu0 0
    %1827 = vmatpush1.bf16.msra.mxu0 0
    %1828 = vmatprep.subr.bf16.mxu0 0
    %1829 = vmatpush1.bf16.msra.mxu0 %v107
    %1830 = vmatprep.subr.bf16.mxu0 0
    %1831 = vmatpush1.bf16.msra.mxu0 %v106
    %1832 = vmatprep.subr.bf16.mxu0 0
    %1833 = vmatpush2.bf16.msra.mxu0 0
    %1834 = vmatprep.subr.bf16.mxu0 0
    %1835 = vmatpush2.bf16.msra.mxu0 0
    %1836 = vmatprep.subr.bf16.mxu0 0
    %1837 = vmatpush2.bf16.msra.mxu0 0
    %1838 = vmatprep.subr.bf16.mxu0 0
    %1839 = vmatpush2.bf16.msra.mxu0 0
    %1840 = vmatprep.subr.bf16.mxu0 0
    %1841 = vmatpush2.bf16.msra.mxu0 0
    %1842 = vmatprep.subr.bf16.mxu0 0
    %1843 = vmatpush2.bf16.msra.mxu0 0
    %1844 = vmatprep.subr.bf16.mxu0 0
    %1845 = vmatpush2.bf16.msra.mxu0 0
    %1846 = vmatprep.subr.bf16.mxu0 0
    %1847 = vmatpush2.bf16.msra.mxu0 0
    %1848 = vmatprep.mubr.bf16.mxu0 0
    %1849 = vmatmul.mubr.bf16.gmra.mxu0 %v1689
    %v1850 = vpop.f32.mrf.mxu0
    %v1851 = vadd.f32 0.0, %v1850
    %v1852 = vpop.f32.mrf.mxu0
    %v1853 = vpop.f32.mrf.mxu0
    %v1854 = vpop.f32.mrf.mxu0
    %1855 = vdwg.mxu0
    %v1857 = vrot.slane %v1851, 1
    %v1859 = vadd.f32 %v92, %v1857
    %v1860 = vtanh.pop %v1859
    %v1861 = vadd.f32 %v1860, 1.0
    %v1862 = vmul.f32 %v1861, 0.5
    %v1864 = vrot.slane %v1636, 7
    %v1866 = vmul.f32 %v1862, %v1864
    %1868 = vrot.lane.b32.xlu0 %v1860, 64
    %v1869 = vpop.permute.xlu0 %1868
    %v1871 = vmul.f32 %v1862, %v1869
    %1873 = vrot.lane.b32.xlu0 %v1871, 32
    %v1874 = vpop.permute.xlu0 %1873
    %v1876 = vadd.f32 %v1866, %v1874
    %v1877 = vtanh.pop %v1876
    %1879 = vrot.lane.b32.xlu0 %v1877, 64
    %v1880 = vpop.permute.xlu0 %1879
    %v1882 = vmul.f32 %v1862, %v1880
    %v1883 = vpack.c.bf16 %v1882, %v1882
    %1884 = vmatprep.subr.bf16.mxu0 0
    %1885 = vmatpush1.bf16.msra.mxu0 0
    %1886 = vmatprep.subr.bf16.mxu0 0
    %1887 = vmatpush1.bf16.msra.mxu0 0
    %1888 = vmatprep.subr.bf16.mxu0 0
    %1889 = vmatpush1.bf16.msra.mxu0 0
    %1890 = vmatprep.subr.bf16.mxu0 0
    %1891 = vmatpush1.bf16.msra.mxu0 0
    %1892 = vmatprep.subr.bf16.mxu0 0
    %1893 = vmatpush1.bf16.msra.mxu0 0
    %1894 = vmatprep.subr.bf16.mxu0 0
    %1895 = vmatpush1.bf16.msra.mxu0 0
    %1896 = vmatprep.subr.bf16.mxu0 0
    %1897 = vmatpush1.bf16.msra.mxu0 %v185
    %1898 = vmatprep.subr.bf16.mxu0 0
    %1899 = vmatpush1.bf16.msra.mxu0 %v184
    %1900 = vmatprep.subr.bf16.mxu0 0
    %1901 = vmatpush2.bf16.msra.mxu0 0
    %1902 = vmatprep.subr.bf16.mxu0 0
    %1903 = vmatpush2.bf16.msra.mxu0 0
    %1904 = vmatprep.subr.bf16.mxu0 0
    %1905 = vmatpush2.bf16.msra.mxu0 0
    %1906 = vmatprep.subr.bf16.mxu0 0
    %1907 = vmatpush2.bf16.msra.mxu0 0
    %1908 = vmatprep.subr.bf16.mxu0 0
    %1909 = vmatpush2.bf16.msra.mxu0 0
    %1910 = vmatprep.subr.bf16.mxu0 0
    %1911 = vmatpush2.bf16.msra.mxu0 0
    %1912 = vmatprep.subr.bf16.mxu0 0
    %1913 = vmatpush2.bf16.msra.mxu0 0
    %1914 = vmatprep.subr.bf16.mxu0 0
    %1915 = vmatpush2.bf16.msra.mxu0 0
    %1916 = vmatprep.mubr.bf16.mxu0 0
    %1917 = vmatmul.mubr.bf16.gmra.mxu0 %v1773
    %v1918 = vpop.f32.mrf.mxu0
    %v1919 = vadd.f32 0.0, %v1918
    %v1920 = vpop.f32.mrf.mxu0
    %v1921 = vpop.f32.mrf.mxu0
    %v1922 = vpop.f32.mrf.mxu0
    %1923 = vdwg.mxu0
    %v1925 = vshrl.u32 %v1883, 16
    %v1927 = vrot.slane %v1925, 3
    %1928 = vrot.lane.b32.xlu0 %v1927, 32
    %v1929 = vpop.permute.xlu0 %1928
    %v1931 = vsel %vm110, %v1929, 0
    %1933 = vmatprep.subr.bf16.mxu0 0
    %1934 = vmatpush1.bf16.msra.mxu0 0
    %1935 = vmatprep.subr.bf16.mxu0 0
    %1936 = vmatpush1.bf16.msra.mxu0 0
    %1937 = vmatprep.subr.bf16.mxu0 0
    %1938 = vmatpush1.bf16.msra.mxu0 0
    %1939 = vmatprep.subr.bf16.mxu0 0
    %1940 = vmatpush1.bf16.msra.mxu0 0
    %1941 = vmatprep.subr.bf16.mxu0 0
    %1942 = vmatpush1.bf16.msra.mxu0 0
    %1943 = vmatprep.subr.bf16.mxu0 0
    %1944 = vmatpush1.bf16.msra.mxu0 0
    %1945 = vmatprep.subr.bf16.mxu0 0
    %1946 = vmatpush1.bf16.msra.mxu0 %v240
    %1947 = vmatprep.subr.bf16.mxu0 0
    %1948 = vmatpush1.bf16.msra.mxu0 %v239
    %1949 = vmatprep.subr.bf16.mxu0 0
    %1950 = vmatpush2.bf16.msra.mxu0 0
    %1951 = vmatprep.subr.bf16.mxu0 0
    %1952 = vmatpush2.bf16.msra.mxu0 0
    %1953 = vmatprep.subr.bf16.mxu0 0
    %1954 = vmatpush2.bf16.msra.mxu0 0
    %1955 = vmatprep.subr.bf16.mxu0 0
    %1956 = vmatpush2.bf16.msra.mxu0 0
    %1957 = vmatprep.subr.bf16.mxu0 0
    %1958 = vmatpush2.bf16.msra.mxu0 0
    %1959 = vmatprep.subr.bf16.mxu0 0
    %1960 = vmatpush2.bf16.msra.mxu0 0
    %1961 = vmatprep.subr.bf16.mxu0 0
    %1962 = vmatpush2.bf16.msra.mxu0 0
    %1963 = vmatprep.subr.bf16.mxu0 0
    %1964 = vmatpush2.bf16.msra.mxu0 0
    %1965 = vmatprep.mubr.bf16.mxu0 0
    %1966 = vmatmul.mubr.bf16.gmra.mxu0 %v1931
    %v1967 = vpop.f32.mrf.mxu0
    %v1968 = vadd.f32 %v1919, %v1967
    %v1969 = vpop.f32.mrf.mxu0
    %v1970 = vpop.f32.mrf.mxu0
    %v1971 = vpop.f32.mrf.mxu0
    %1972 = vdwg.mxu0
    %v1973 = vadd.f32 %v1968, %v43
    %v1974 = vtanh.pop %v1973
    %v1975 = vadd.f32 %v1974, 1.0
    %v1976 = vmul.f32 %v1975, 0.5
    %v1977 = vmul.f32 %v1976, %v1745
    %1979 = vrot.lane.b32.xlu0 %v1974, 64
    %v1980 = vpop.permute.xlu0 %1979
    %v1982 = vmul.f32 %v1976, %v1980
    %1984 = vrot.lane.b32.xlu0 %v1982, 32
    %v1985 = vpop.permute.xlu0 %1984
    %v1987 = vadd.f32 %v1977, %v1985
    %v1988 = vtanh.pop %v1987
    %1990 = vrot.lane.b32.xlu0 %v1988, 64
    %v1991 = vpop.permute.xlu0 %1990
    %v1993 = vmul.f32 %v1976, %v1991
    %v1994 = vpack.c.bf16 %v1993, %v1993
    %v1995 = vld [vmem:[#allocation2 + $0xa4] sm:$0xf]
    %v1996 = vld [vmem:[#allocation2 + $0xa8] sm:$0xf]
    %v1997 = vld [vmem:[#allocation2 + $0xac] sm:$0xf]
    %v1998 = vld [vmem:[#allocation2 + $0xb0] sm:$0xf]
    %2000 = vrot.lane.b32.xlu0 %v1994, 32
    %v2001 = vpop.permute.xlu0 %2000
    %v2006 = vunpack.c.l.b16 %v1995
    %v2007 = vunpack.c.l.b16 %v1996
    %v2008 = vunpack.c.l.b16 %v1997
    %v2009 = vunpack.c.l.b16 %v1998
    %v2010 = vpack.c.b16 %v2007, %v2006
    %v2011 = vpack.c.b16 %v2009, %v2008
    %v2015 = vsel %vm110, %v2001, 0
    %2017 = vmatprep.subr.bf16.mxu0 0
    %2018 = vmatpush1.bf16.msra.mxu0 0
    %2019 = vmatprep.subr.bf16.mxu0 0
    %2020 = vmatpush1.bf16.msra.mxu0 0
    %2021 = vmatprep.subr.bf16.mxu0 0
    %2022 = vmatpush1.bf16.msra.mxu0 0
    %2023 = vmatprep.subr.bf16.mxu0 0
    %2024 = vmatpush1.bf16.msra.mxu0 0
    %2025 = vmatprep.subr.bf16.mxu0 0
    %2026 = vmatpush1.bf16.msra.mxu0 0
    %2027 = vmatprep.subr.bf16.mxu0 0
    %2028 = vmatpush1.bf16.msra.mxu0 0
    %2029 = vmatprep.subr.bf16.mxu0 0
    %2030 = vmatpush1.bf16.msra.mxu0 %v2011
    %2031 = vmatprep.subr.bf16.mxu0 0
    %2032 = vmatpush1.bf16.msra.mxu0 %v2010
    %2033 = vmatprep.subr.bf16.mxu0 0
    %2034 = vmatpush2.bf16.msra.mxu0 0
    %2035 = vmatprep.subr.bf16.mxu0 0
    %2036 = vmatpush2.bf16.msra.mxu0 0
    %2037 = vmatprep.subr.bf16.mxu0 0
    %2038 = vmatpush2.bf16.msra.mxu0 0
    %2039 = vmatprep.subr.bf16.mxu0 0
    %2040 = vmatpush2.bf16.msra.mxu0 0
    %2041 = vmatprep.subr.bf16.mxu0 0
    %2042 = vmatpush2.bf16.msra.mxu0 0
    %2043 = vmatprep.subr.bf16.mxu0 0
    %2044 = vmatpush2.bf16.msra.mxu0 0
    %2045 = vmatprep.subr.bf16.mxu0 0
    %2046 = vmatpush2.bf16.msra.mxu0 0
    %2047 = vmatprep.subr.bf16.mxu0 0
    %2048 = vmatpush2.bf16.msra.mxu0 0
    %2049 = vmatprep.mubr.bf16.mxu0 0
    %2050 = vmatmul.mubr.bf16.gmra.mxu0 %v2015
    %v2051 = vpop.f32.mrf.mxu0
    %v2052 = vadd.f32 0.0, %v2051
    %v2053 = vpop.f32.mrf.mxu0
    %v2054 = vpop.f32.mrf.mxu0
    %v2055 = vpop.f32.mrf.mxu0
    %2056 = vdwg.mxu0
    %v2057 = vadd.f32 %v1815, %v2052
    %2058 = vst [vmem:[%s3] sm:$0xff] 0.0
    %2059 = vst [vmem:[%s3] sm:$0x1] %v2057
    %2061 = vrot.lane.b32.xlu0 %v1882, 32
    %v2062 = vpop.permute.xlu0 %2061
    %vm2064 = vcmask 261127
    %2065 = vst.msk [vmem:[%s3 - $0x6] sm:$0x80] %vm2064, %v2062
    %2067 = vrot.lane.b32.xlu0 %v1993, 32
    %v2068 = vpop.permute.xlu0 %2067
    %vm2070 = vcmask 253952
    %2071 = vst.msk [vmem:[%s3 + $0x2] sm:$0x1] %vm2070, %v2068
    %2073 = vrot.lane.b32.xlu0 %v1876, 96
    %v2074 = vpop.permute.xlu0 %2073
    %2076 = vst.msk [vmem:[%s3 - $0x4] sm:$0x80] %vm2064, %v2074
    %2078 = vrot.lane.b32.xlu0 %v1987, 96
    %v2079 = vpop.permute.xlu0 %2078
    %2081 = vst.msk [vmem:[%s3 + $0x4] sm:$0x1] %vm2070, %v2079
    // Predicated region
    $region18: #{lstm_forward.1} parent=1 // pred_check
      _
    $region19: #{lstm_forward.1} parent=1 // pred_check_branch
      %2083 = sbr.rel (0) target = $region21
    $region20: #{lstm_forward.1} parent=1 // pred_region
      _
    $region21: #{lstm_forward.1} parent=1 // pred_fallthru
      _
    // Predicated region
    $region22: #{lstm_forward.1} parent=1 // pred_check
      _
    $region23: #{lstm_forward.1} parent=1 // pred_check_branch
      %2085 = sbr.rel (0) target = $region25
    $region24: #{lstm_forward.1} parent=1 // pred_region
      _
    $region25: #{lstm_forward.1} parent=1 // pred_fallthru
      _
    %2086 = vsyncpa [#allocation3], 1

</llo_original>
